<compile_context>
chip_gen: v5e
topology: v5e:2x2
jax: 0.10.0
libtpu: 0.0.40
codegen_flags: <defaults>
</compile_context>

<pallas_src>
import functools

import jax
import jax.numpy as jnp
from jax.experimental import pallas as pl
from jax.experimental.pallas import tpu as pltpu


# ----------------------------------------------------------------------------
# Pallas kernel
#
# Kernel-side layouts (built wrapper-side in `pack_params` / `bilstm_forward`):
#   x_ref   : [S, Bt, 2E]    bf16  (per-step concat of x[t] and x[S-1-t])
#   wih_ref : [2E, 4*GW]     bf16  (block-diag input weights: rows [0,E) -> fwd
#                                   lanes, rows [E,2E) -> bwd lanes, per gate)
#   b_ref   : [1, 4*GW]      f32   (b_ih + b_hh, both dirs, gate-blocked)
#   whh_ref : [GW, 4*GW]     bf16  (block-diag recurrent weights, both dirs)
#   fcw_ref : [GW, GW]       bf16  (fc weight: rows 0:H fwd, H:2H bwd, O lanes)
#   fcb_ref : [1, GW]        f32
#   out_ref : [Bt, GW]       f32   (lanes 0:O are the real logits)
#   xg_ref  : [S*Bt, 4*GW]   bf16  VMEM scratch for the hoisted projection
#
# Within each GW(=128)-lane gate block (kernel gate order i, f, o, g):
#   lanes [0, H)  -> forward direction, lanes [H, 2H) -> backward, rest zero.
# ----------------------------------------------------------------------------
def bilstm_kernel(x_ref, wih_ref, b_ref, whh_ref, fcw_ref, fcb_ref,
                  out_ref, xg_ref,
                  *, seq_len, block_b, hidden, gate_w):
    S, Bt, H, GW = seq_len, block_b, hidden, gate_w
    NG = 4  # gates: i, f, o, g

    # ---- Hoisted input projection (+ bias fold), once for all steps/dirs ----
    # The time alignment (fwd lanes see x[t], bwd lanes see x[S-1-t]) is
    # already encoded in x_ref / wih_ref, so nothing direction-related remains
    # on the serial recurrence chain.
    x2d = x_ref[...].reshape(S * Bt, x_ref.shape[2])
    xg_ref[...] = (
        jnp.dot(x2d, wih_ref[...], preferred_element_type=jnp.float32)
        + b_ref[...]).astype(xg_ref.dtype)              # [S*Bt, 4*GW] bf16

    cc = jnp.zeros((Bt, GW), jnp.float32)   # [c_fwd | c_bwd | pad]
    hc = jnp.zeros((Bt, GW), jnp.bfloat16)  # [h_fwd | h_bwd | pad]

    # ---- Fused, fully-unrolled bidirectional recurrence ----
    # (For large S, replace with lax.fori_loop(..., unroll=4..8).)
    for t in range(S):
        gates = (xg_ref[t * Bt:(t + 1) * Bt, :]
                 + jnp.dot(hc, whh_ref[...],
                           preferred_element_type=jnp.float32))  # [Bt, 4*GW] f32

        # Gate order (i, f, o, g): the three sigmoid gates are contiguous, so
        # one tanh-based sigmoid (single EUP push per vreg) covers lanes
        # [0, 3*GW); all slices are whole-vreg (128-lane) aligned.
        sg = 0.5 * jnp.tanh(0.5 * gates[:, 0:3 * GW]) + 0.5
        i = sg[:, 0 * GW:1 * GW]
        f = sg[:, 1 * GW:2 * GW]
        o = sg[:, 2 * GW:3 * GW]
        g = jnp.tanh(gates[:, 3 * GW:4 * GW])

        cc = f * cc + i * g
        hc = (o * jnp.tanh(cc)).astype(jnp.bfloat16)   # bf16 matmul LHS directly

    # fc(cat(h_fwd, h_bwd)) with the concat already encoded in fcw's rows;
    # output padded to a full 128-lane block -> unmasked, lane-dense store.
    out = (jnp.dot(hc, fcw_ref[...], preferred_element_type=jnp.float32)
           + fcb_ref[...])
    out_ref[...] = out.astype(out_ref.dtype)


# ----------------------------------------------------------------------------
# Wrapper: embedding-bag (mean) glue in plain JAX + one pallas_call.
# ----------------------------------------------------------------------------
def bilstm_forward(text, packed, *, hidden_dim, output_dim, gate_w=128):
    # TODO(synk): EmbeddingBag mean-pool is a data-dependent vocab gather; it
    # stays as plain-JAX glue rather than an in-kernel DMA gather.
    embedded = jnp.take(packed["emb"], text, axis=0).mean(axis=2)  # [S, B, E]
    # Dropout: identity (eval / inference semantics).

    S, B, E = embedded.shape
    H, O, GW = hidden_dim, output_dim, gate_w

    # Pad batch to the bf16 sublane quantum (16); tile batch into a parallel
    # grid axis once it exceeds one MXU-height tile (v7x megacore split).
    Bp = max(16, -(-B // 16) * 16)
    tb = Bp if Bp <= 128 else 128
    Bp = -(-Bp // tb) * tb
    grid = (Bp // tb,)

    x = jnp.pad(embedded.astype(jnp.bfloat16), ((0, 0), (0, Bp - B), (0, 0)))
    # Time-aligned combined input: features [0,E) are x[t] (forward lanes),
    # features [E,2E) are x[S-1-t] (backward lanes).  The direction routing is
    # done by the block-diagonal wih packing, so the kernel never selects.
    xcat = jnp.concatenate([x, x[::-1]], axis=-1)       # [S, Bp, 2E] bf16

    kernel = functools.partial(bilstm_kernel, seq_len=S, block_b=tb,
                               hidden=H, gate_w=GW)

    out = pl.pallas_call(
        kernel,
        out_shape=jax.ShapeDtypeStruct((Bp, GW), jnp.float32),
        grid=grid,
        in_specs=[
            pl.BlockSpec((S, tb, 2 * E), lambda b: (0, b, 0)),     # xcat
            pl.BlockSpec((2 * E, 4 * GW), lambda b: (0, 0)),       # wih_bd
            pl.BlockSpec((1, 4 * GW), lambda b: (0, 0)),           # biases
            pl.BlockSpec((GW, 4 * GW), lambda b: (0, 0)),          # whh_bd
            pl.BlockSpec((GW, GW), lambda b: (0, 0)),              # fc weight
            pl.BlockSpec((1, GW), lambda b: (0, 0)),               # fc bias
        ],
        out_specs=pl.BlockSpec((tb, GW), lambda b: (b, 0)),
        scratch_shapes=[pltpu.VMEM((S * tb, 4 * GW), jnp.bfloat16)],
        compiler_params=pltpu.CompilerParams(
            dimension_semantics=("parallel",)),
    )(xcat, packed["wih_bd"], packed["b_all"], packed["whh_bd"],
      packed["fcw"], packed["fcb"])

    return out[:B, :O]


# ----------------------------------------------------------------------------
# Parameter construction: synthetic PyTorch-layout weights + kernel packing.
# ----------------------------------------------------------------------------
def pack_params(raw, H, O, GW=128):
    """Re-layout PyTorch-style LSTM/Linear weights into the fused, gate-blocked
    kernel layout.  Each gate gets a 128-lane block [fwd H | bwd H | zeros];
    kernel gate order is (i, f, o, g) so the sigmoid gates are contiguous."""
    assert 2 * H <= GW and O <= GW
    wih_f_t = raw["wih_f"].T     # [E, 4H]   PyTorch gate order i,f,g,o in cols
    wih_b_t = raw["wih_b"].T
    whh_f_t = raw["whh_f"].T     # [H, 4H]
    whh_b_t = raw["whh_b"].T
    E = wih_f_t.shape[0]
    perm = (0, 1, 3, 2)          # kernel block k <- PyTorch gate perm[k]

    wih_bd = jnp.zeros((2 * E, 4 * GW), jnp.float32)
    b_all = jnp.zeros((1, 4 * GW), jnp.float32)
    whh_bd = jnp.zeros((GW, 4 * GW), jnp.float32)
    for k, p in enumerate(perm):
        c0 = k * GW
        gsl = slice(p * H, (p + 1) * H)
        # Input weights: rows [0,E) multiply x[t] (fwd lanes), rows [E,2E)
        # multiply x[S-1-t] (bwd lanes) -- wrapper feeds concat([x, x_rev], -1).
        wih_bd = wih_bd.at[:E, c0:c0 + H].set(wih_f_t[:, gsl])
        wih_bd = wih_bd.at[E:, c0 + H:c0 + 2 * H].set(wih_b_t[:, gsl])
        b_all = b_all.at[0, c0:c0 + H].set(raw["b_f"][gsl])
        b_all = b_all.at[0, c0 + H:c0 + 2 * H].set(raw["b_b"][gsl])
        whh_bd = whh_bd.at[:H, c0:c0 + H].set(whh_f_t[:, gsl])
        whh_bd = whh_bd.at[H:2 * H, c0 + H:c0 + 2 * H].set(whh_b_t[:, gsl])

    fcw = jnp.zeros((GW, GW), jnp.float32)
    fcw = fcw.at[:H, :O].set(raw["fc_w"][:, :H].T)        # applied to h_fwd
    fcw = fcw.at[H:2 * H, :O].set(raw["fc_w"][:, H:].T)   # applied to h_bwd
    fcb = jnp.zeros((1, GW), jnp.float32).at[0, :O].set(raw["fc_b"])

    return dict(
        emb=raw["emb"],
        wih_bd=wih_bd.astype(jnp.bfloat16),     # bf16 MXU inputs,
        whh_bd=whh_bd.astype(jnp.bfloat16),     # f32 accumulation in-kernel
        fcw=fcw.astype(jnp.bfloat16),
        b_all=b_all,                            # biases stay f32 (post-matmul add)
        fcb=fcb,
    )


def init_params(key, vocab, E, H, O, GW=128):
    ks = jax.random.split(key, 11)

    def uni(k, shape, scale):
        return jax.random.uniform(k, shape, jnp.float32, -scale, scale)

    emb = jax.random.normal(ks[0], (vocab, E), jnp.float32)
    sH = 1.0 / (H ** 0.5)
    wih_f = uni(ks[1], (4 * H, E), sH); whh_f = uni(ks[2], (4 * H, H), sH)
    bih_f = uni(ks[3], (4 * H,), sH);   bhh_f = uni(ks[4], (4 * H,), sH)
    wih_b = uni(ks[5], (4 * H, E), sH); whh_b = uni(ks[6], (4 * H, H), sH)
    bih_b = uni(ks[7], (4 * H,), sH);   bhh_b = uni(ks[8], (4 * H,), sH)
    sF = 1.0 / ((2 * H) ** 0.5)
    fc_w = uni(ks[9], (O, 2 * H), sF)
    fc_b = uni(ks[10], (O,), sF)

    raw = dict(emb=emb,
               wih_f=wih_f, whh_f=whh_f, b_f=bih_f + bhh_f,
               wih_b=wih_b, whh_b=whh_b, b_b=bih_b + bhh_b,
               fc_w=fc_w, fc_b=fc_b)
    return raw, pack_params(raw, H, O, GW)


# Pure-f32 JAX reference (PyTorch semantics) for sanity checking the kernel.
def ref_forward(text, raw):
    emb = jnp.take(raw["emb"], text, axis=0).mean(axis=2)  # [S, B, E]
    S, B, _ = emb.shape
    H = raw["whh_f"].shape[1]

    def run(x_seq, wih, whh, b):
        h = jnp.zeros((B, H), jnp.float32)
        c = jnp.zeros((B, H), jnp.float32)
        for t in range(S):
            gates = x_seq[t] @ wih.T + h @ whh.T + b
            i = jax.nn.sigmoid(gates[:, :H])
            f = jax.nn.sigmoid(gates[:, H:2 * H])
            g = jnp.tanh(gates[:, 2 * H:3 * H])
            o = jax.nn.sigmoid(gates[:, 3 * H:])
            c = f * c + i * g
            h = o * jnp.tanh(c)
        return h

    h_fwd = run(emb, raw["wih_f"], raw["whh_f"], raw["b_f"])          # hidden[-2]
    h_bwd = run(emb[::-1], raw["wih_b"], raw["whh_b"], raw["b_b"])    # hidden[-1]
    return jnp.concatenate([h_fwd, h_bwd], axis=1) @ raw["fc_w"].T + raw["fc_b"]


if __name__ == "__main__":
    VOCAB = 50          # len(embedding_weights)
    EMBED_DIM = 32
    HIDDEN_DIM = 32
    OUTPUT_DIM = 8
    SEQ_LEN, BATCH, BAG = 8, 4, 3
    # dropout has no effect in the inference forward pass (identity).

    key = jax.random.PRNGKey(0)
    raw, packed = init_params(key, VOCAB, EMBED_DIM, HIDDEN_DIM, OUTPUT_DIM)
    text = jax.random.randint(jax.random.fold_in(key, 123),
                              (SEQ_LEN, BATCH, BAG), 0, VOCAB, dtype=jnp.int32)

    out = bilstm_forward(text, packed,
                         hidden_dim=HIDDEN_DIM, output_dim=OUTPUT_DIM)
    out = jax.block_until_ready(out)

    ref = ref_forward(text, raw)
    assert out.shape == (BATCH, OUTPUT_DIM)
    max_err = float(jnp.max(jnp.abs(out - ref)))
    # bf16 MXU inputs / bf16 hidden state vs. f32 reference: bf16-level tolerance.
    assert max_err < 2e-2, f"kernel/reference mismatch, max abs err {max_err}"

    print("KERNEL_OK")
</pallas_src>

<mosaic_0001>
module attributes {stable_mosaic.version = 11 : i64} {
  func.func @bilstm_kernel(%arg0: i32, %arg1: memref<8x16x64xbf16, #tpu.memory_space<vmem>>, %arg2: memref<64x512xbf16, #tpu.memory_space<vmem>>, %arg3: memref<1x512xf32, #tpu.memory_space<vmem>>, %arg4: memref<128x512xbf16, #tpu.memory_space<vmem>>, %arg5: memref<128x128xbf16, #tpu.memory_space<vmem>>, %arg6: memref<1x128xf32, #tpu.memory_space<vmem>>, %arg7: memref<16x128xf32, #tpu.memory_space<vmem>>, %arg8: memref<128x512xbf16, #tpu.memory_space<vmem>>) attributes {dimension_semantics = [#tpu.dimension_semantics<parallel>], iteration_bounds = array<i64: 1>, scalar_prefetch = 0 : i64, scratch_operands = 1 : i64, tpu.core_type = #tpu.core_type<tc>, window_params = [{transform_indices = @transform_0, window_bounds = array<i64: 8, 16, 64>}, {pipeline_mode = #tpu.pipeline_mode<synchronous>, transform_indices = @transform_1, window_bounds = array<i64: 64, 512>}, {pipeline_mode = #tpu.pipeline_mode<synchronous>, transform_indices = @transform_2, window_bounds = array<i64: 1, 512>}, {pipeline_mode = #tpu.pipeline_mode<synchronous>, transform_indices = @transform_3, window_bounds = array<i64: 128, 512>}, {pipeline_mode = #tpu.pipeline_mode<synchronous>, transform_indices = @transform_4, window_bounds = array<i64: 128, 128>}, {pipeline_mode = #tpu.pipeline_mode<synchronous>, transform_indices = @transform_5, window_bounds = array<i64: 1, 128>}, {transform_indices = @transform_6, window_bounds = array<i64: 16, 128>}]} {
    %c0 = arith.constant 0 : index
    %c0_0 = arith.constant 0 : index
    %c0_1 = arith.constant 0 : index
    %0 = vector.load %arg1[%c0, %c0_0, %c0_1] : memref<8x16x64xbf16, #tpu.memory_space<vmem>>, vector<8x16x64xbf16>
    %1 = vector.shape_cast %0 : vector<8x16x64xbf16> to vector<128x64xbf16>
    %c0_2 = arith.constant 0 : index
    %c0_3 = arith.constant 0 : index
    %2 = vector.load %arg2[%c0_2, %c0_3] : memref<64x512xbf16, #tpu.memory_space<vmem>>, vector<64x512xbf16>
    %cst = arith.constant dense<0.000000e+00> : vector<128x512xf32>
    %3 = tpu.matmul %1, %2, %cst {dimension_numbers = #tpu.dot_dimension_numbers<[1], [0], [0], [1], [0, 0, 1, 1], [], []>} : vector<128x64xbf16>, vector<64x512xbf16>, vector<128x512xf32> -> vector<128x512xf32>
    %c0_4 = arith.constant 0 : index
    %c0_5 = arith.constant 0 : index
    %4 = vector.load %arg3[%c0_4, %c0_5] : memref<1x512xf32, #tpu.memory_space<vmem>>, vector<1x512xf32>
    %5 = vector.broadcast %4 : vector<1x512xf32> to vector<128x512xf32>
    %6 = arith.addf %3, %5 : vector<128x512xf32>
    %7 = arith.truncf %6 : vector<128x512xf32> to vector<128x512xbf16>
    %c0_6 = arith.constant 0 : index
    %c0_7 = arith.constant 0 : index
    %8 = vector.load %arg8[%c0_6, %c0_7] : memref<128x512xbf16, #tpu.memory_space<vmem>>, vector<128x512xbf16>
    tpu.vector_store %arg8[%c0_6, %c0_7], %7 {strides = array<i32>} : memref<128x512xbf16, #tpu.memory_space<vmem>>, vector<128x512xbf16>,
    %cst_8 = arith.constant 0.000000e+00 : f32
    %9 = vector.broadcast %cst_8 : f32 to vector<16x128xf32>
    %cst_9 = arith.constant 0.000000e+00 : bf16
    %10 = vector.broadcast %cst_9 : bf16 to vector<16x128xbf16>
    %c0_10 = arith.constant 0 : index
    %c0_11 = arith.constant 0 : index
    %11 = vector.load %arg8[%c0_10, %c0_11] : memref<128x512xbf16, #tpu.memory_space<vmem>>, vector<16x512xbf16>
    %c0_12 = arith.constant 0 : index
    %c0_13 = arith.constant 0 : index
    %12 = vector.load %arg4[%c0_12, %c0_13] : memref<128x512xbf16, #tpu.memory_space<vmem>>, vector<128x512xbf16>
    %cst_14 = arith.constant dense<0.000000e+00> : vector<16x512xf32>
    %13 = tpu.matmul %10, %12, %cst_14 {dimension_numbers = #tpu.dot_dimension_numbers<[1], [0], [0], [1], [0, 0, 1, 1], [], []>} : vector<16x128xbf16>, vector<128x512xbf16>, vector<16x512xf32> -> vector<16x512xf32>
    %14 = arith.extf %11 : vector<16x512xbf16> to vector<16x512xf32>
    %15 = arith.addf %14, %13 : vector<16x512xf32>
    %16 = vector.extract_strided_slice %15 {offsets = [0, 0], sizes = [16, 384], strides = [1, 1]} : vector<16x512xf32> to vector<16x384xf32>
    %cst_15 = arith.constant 5.000000e-01 : f32
    %17 = vector.broadcast %cst_15 : f32 to vector<16x384xf32>
    %18 = arith.mulf %17, %16 : vector<16x384xf32>
    %19 = math.tanh %18 : vector<16x384xf32>
    %cst_16 = arith.constant 5.000000e-01 : f32
    %20 = vector.broadcast %cst_16 : f32 to vector<16x384xf32>
    %21 = arith.mulf %20, %19 : vector<16x384xf32>
    %cst_17 = arith.constant 5.000000e-01 : f32
    %22 = vector.broadcast %cst_17 : f32 to vector<16x384xf32>
    %23 = arith.addf %21, %22 : vector<16x384xf32>
    %24 = vector.extract_strided_slice %23 {offsets = [0, 0], sizes = [16, 128], strides = [1, 1]} : vector<16x384xf32> to vector<16x128xf32>
    %25 = vector.extract_strided_slice %23 {offsets = [0, 128], sizes = [16, 128], strides = [1, 1]} : vector<16x384xf32> to vector<16x128xf32>
    %26 = vector.extract_strided_slice %23 {offsets = [0, 256], sizes = [16, 128], strides = [1, 1]} : vector<16x384xf32> to vector<16x128xf32>
    %27 = vector.extract_strided_slice %15 {offsets = [0, 384], sizes = [16, 128], strides = [1, 1]} : vector<16x512xf32> to vector<16x128xf32>
    %28 = math.tanh %27 : vector<16x128xf32>
    %29 = arith.mulf %25, %9 : vector<16x128xf32>
    %30 = arith.mulf %24, %28 : vector<16x128xf32>
    %31 = arith.addf %29, %30 : vector<16x128xf32>
    %32 = math.tanh %31 : vector<16x128xf32>
    %33 = arith.mulf %26, %32 : vector<16x128xf32>
    %34 = arith.truncf %33 : vector<16x128xf32> to vector<16x128xbf16>
    %c16 = arith.constant 16 : index
    %c0_18 = arith.constant 0 : index
    %35 = vector.load %arg8[%c16, %c0_18] : memref<128x512xbf16, #tpu.memory_space<vmem>>, vector<16x512xbf16>
    %c0_19 = arith.constant 0 : index
    %c0_20 = arith.constant 0 : index
    %36 = vector.load %arg4[%c0_19, %c0_20] : memref<128x512xbf16, #tpu.memory_space<vmem>>, vector<128x512xbf16>
    %cst_21 = arith.constant dense<0.000000e+00> : vector<16x512xf32>
    %37 = tpu.matmul %34, %36, %cst_21 {dimension_numbers = #tpu.dot_dimension_numbers<[1], [0], [0], [1], [0, 0, 1, 1], [], []>} : vector<16x128xbf16>, vector<128x512xbf16>, vector<16x512xf32> -> vector<16x512xf32>
    %38 = arith.extf %35 : vector<16x512xbf16> to vector<16x512xf32>
    %39 = arith.addf %38, %37 : vector<16x512xf32>
    %40 = vector.extract_strided_slice %39 {offsets = [0, 0], sizes = [16, 384], strides = [1, 1]} : vector<16x512xf32> to vector<16x384xf32>
    %cst_22 = arith.constant 5.000000e-01 : f32
    %41 = vector.broadcast %cst_22 : f32 to vector<16x384xf32>
    %42 = arith.mulf %41, %40 : vector<16x384xf32>
    %43 = math.tanh %42 : vector<16x384xf32>
    %cst_23 = arith.constant 5.000000e-01 : f32
    %44 = vector.broadcast %cst_23 : f32 to vector<16x384xf32>
    %45 = arith.mulf %44, %43 : vector<16x384xf32>
    %cst_24 = arith.constant 5.000000e-01 : f32
    %46 = vector.broadcast %cst_24 : f32 to vector<16x384xf32>
    %47 = arith.addf %45, %46 : vector<16x384xf32>
    %48 = vector.extract_strided_slice %47 {offsets = [0, 0], sizes = [16, 128], strides = [1, 1]} : vector<16x384xf32> to vector<16x128xf32>
    %49 = vector.extract_strided_slice %47 {offsets = [0, 128], sizes = [16, 128], strides = [1, 1]} : vector<16x384xf32> to vector<16x128xf32>
    %50 = vector.extract_strided_slice %47 {offsets = [0, 256], sizes = [16, 128], strides = [1, 1]} : vector<16x384xf32> to vector<16x128xf32>
    %51 = vector.extract_strided_slice %39 {offsets = [0, 384], sizes = [16, 128], strides = [1, 1]} : vector<16x512xf32> to vector<16x128xf32>
    %52 = math.tanh %51 : vector<16x128xf32>
    %53 = arith.mulf %49, %31 : vector<16x128xf32>
    %54 = arith.mulf %48, %52 : vector<16x128xf32>
    %55 = arith.addf %53, %54 : vector<16x128xf32>
    %56 = math.tanh %55 : vector<16x128xf32>
    %57 = arith.mulf %50, %56 : vector<16x128xf32>
    %58 = arith.truncf %57 : vector<16x128xf32> to vector<16x128xbf16>
    %c32 = arith.constant 32 : index
    %c0_25 = arith.constant 0 : index
    %59 = vector.load %arg8[%c32, %c0_25] : memref<128x512xbf16, #tpu.memory_space<vmem>>, vector<16x512xbf16>
    %c0_26 = arith.constant 0 : index
    %c0_27 = arith.constant 0 : index
    %60 = vector.load %arg4[%c0_26, %c0_27] : memref<128x512xbf16, #tpu.memory_space<vmem>>, vector<128x512xbf16>
    %cst_28 = arith.constant dense<0.000000e+00> : vector<16x512xf32>
    %61 = tpu.matmul %58, %60, %cst_28 {dimension_numbers = #tpu.dot_dimension_numbers<[1], [0], [0], [1], [0, 0, 1, 1], [], []>} : vector<16x128xbf16>, vector<128x512xbf16>, vector<16x512xf32> -> vector<16x512xf32>
    %62 = arith.extf %59 : vector<16x512xbf16> to vector<16x512xf32>
    %63 = arith.addf %62, %61 : vector<16x512xf32>
    %64 = vector.extract_strided_slice %63 {offsets = [0, 0], sizes = [16, 384], strides = [1, 1]} : vector<16x512xf32> to vector<16x384xf32>
    %cst_29 = arith.constant 5.000000e-01 : f32
    %65 = vector.broadcast %cst_29 : f32 to vector<16x384xf32>
    %66 = arith.mulf %65, %64 : vector<16x384xf32>
    %67 = math.tanh %66 : vector<16x384xf32>
    %cst_30 = arith.constant 5.000000e-01 : f32
    %68 = vector.broadcast %cst_30 : f32 to vector<16x384xf32>
    %69 = arith.mulf %68, %67 : vector<16x384xf32>
    %cst_31 = arith.constant 5.000000e-01 : f32
    %70 = vector.broadcast %cst_31 : f32 to vector<16x384xf32>
    %71 = arith.addf %69, %70 : vector<16x384xf32>
    %72 = vector.extract_strided_slice %71 {offsets = [0, 0], sizes = [16, 128], strides = [1, 1]} : vector<16x384xf32> to vector<16x128xf32>
    %73 = vector.extract_strided_slice %71 {offsets = [0, 128], sizes = [16, 128], strides = [1, 1]} : vector<16x384xf32> to vector<16x128xf32>
    %74 = vector.extract_strided_slice %71 {offsets = [0, 256], sizes = [16, 128], strides = [1, 1]} : vector<16x384xf32> to vector<16x128xf32>
    %75 = vector.extract_strided_slice %63 {offsets = [0, 384], sizes = [16, 128], strides = [1, 1]} : vector<16x512xf32> to vector<16x128xf32>
    %76 = math.tanh %75 : vector<16x128xf32>
    %77 = arith.mulf %73, %55 : vector<16x128xf32>
    %78 = arith.mulf %72, %76 : vector<16x128xf32>
    %79 = arith.addf %77, %78 : vector<16x128xf32>
    %80 = math.tanh %79 : vector<16x128xf32>
    %81 = arith.mulf %74, %80 : vector<16x128xf32>
    %82 = arith.truncf %81 : vector<16x128xf32> to vector<16x128xbf16>
    %c48 = arith.constant 48 : index
    %c0_32 = arith.constant 0 : index
    %83 = vector.load %arg8[%c48, %c0_32] : memref<128x512xbf16, #tpu.memory_space<vmem>>, vector<16x512xbf16>
    %c0_33 = arith.constant 0 : index
    %c0_34 = arith.constant 0 : index
    %84 = vector.load %arg4[%c0_33, %c0_34] : memref<128x512xbf16, #tpu.memory_space<vmem>>, vector<128x512xbf16>
    %cst_35 = arith.constant dense<0.000000e+00> : vector<16x512xf32>
    %85 = tpu.matmul %82, %84, %cst_35 {dimension_numbers = #tpu.dot_dimension_numbers<[1], [0], [0], [1], [0, 0, 1, 1], [], []>} : vector<16x128xbf16>, vector<128x512xbf16>, vector<16x512xf32> -> vector<16x512xf32>
    %86 = arith.extf %83 : vector<16x512xbf16> to vector<16x512xf32>
    %87 = arith.addf %86, %85 : vector<16x512xf32>
    %88 = vector.extract_strided_slice %87 {offsets = [0, 0], sizes = [16, 384], strides = [1, 1]} : vector<16x512xf32> to vector<16x384xf32>
    %cst_36 = arith.constant 5.000000e-01 : f32
    %89 = vector.broadcast %cst_36 : f32 to vector<16x384xf32>
    %90 = arith.mulf %89, %88 : vector<16x384xf32>
    %91 = math.tanh %90 : vector<16x384xf32>
    %cst_37 = arith.constant 5.000000e-01 : f32
    %92 = vector.broadcast %cst_37 : f32 to vector<16x384xf32>
    %93 = arith.mulf %92, %91 : vector<16x384xf32>
    %cst_38 = arith.constant 5.000000e-01 : f32
    %94 = vector.broadcast %cst_38 : f32 to vector<16x384xf32>
    %95 = arith.addf %93, %94 : vector<16x384xf32>
    %96 = vector.extract_strided_slice %95 {offsets = [0, 0], sizes = [16, 128], strides = [1, 1]} : vector<16x384xf32> to vector<16x128xf32>
    %97 = vector.extract_strided_slice %95 {offsets = [0, 128], sizes = [16, 128], strides = [1, 1]} : vector<16x384xf32> to vector<16x128xf32>
    %98 = vector.extract_strided_slice %95 {offsets = [0, 256], sizes = [16, 128], strides = [1, 1]} : vector<16x384xf32> to vector<16x128xf32>
    %99 = vector.extract_strided_slice %87 {offsets = [0, 384], sizes = [16, 128], strides = [1, 1]} : vector<16x512xf32> to vector<16x128xf32>
    %100 = math.tanh %99 : vector<16x128xf32>
    %101 = arith.mulf %97, %79 : vector<16x128xf32>
    %102 = arith.mulf %96, %100 : vector<16x128xf32>
    %103 = arith.addf %101, %102 : vector<16x128xf32>
    %104 = math.tanh %103 : vector<16x128xf32>
    %105 = arith.mulf %98, %104 : vector<16x128xf32>
    %106 = arith.truncf %105 : vector<16x128xf32> to vector<16x128xbf16>
    %c64 = arith.constant 64 : index
    %c0_39 = arith.constant 0 : index
    %107 = vector.load %arg8[%c64, %c0_39] : memref<128x512xbf16, #tpu.memory_space<vmem>>, vector<16x512xbf16>
    %c0_40 = arith.constant 0 : index
    %c0_41 = arith.constant 0 : index
    %108 = vector.load %arg4[%c0_40, %c0_41] : memref<128x512xbf16, #tpu.memory_space<vmem>>, vector<128x512xbf16>
    %cst_42 = arith.constant dense<0.000000e+00> : vector<16x512xf32>
    %109 = tpu.matmul %106, %108, %cst_42 {dimension_numbers = #tpu.dot_dimension_numbers<[1], [0], [0], [1], [0, 0, 1, 1], [], []>} : vector<16x128xbf16>, vector<128x512xbf16>, vector<16x512xf32> -> vector<16x512xf32>
    %110 = arith.extf %107 : vector<16x512xbf16> to vector<16x512xf32>
    %111 = arith.addf %110, %109 : vector<16x512xf32>
    %112 = vector.extract_strided_slice %111 {offsets = [0, 0], sizes = [16, 384], strides = [1, 1]} : vector<16x512xf32> to vector<16x384xf32>
    %cst_43 = arith.constant 5.000000e-01 : f32
    %113 = vector.broadcast %cst_43 : f32 to vector<16x384xf32>
    %114 = arith.mulf %113, %112 : vector<16x384xf32>
    %115 = math.tanh %114 : vector<16x384xf32>
    %cst_44 = arith.constant 5.000000e-01 : f32
    %116 = vector.broadcast %cst_44 : f32 to vector<16x384xf32>
    %117 = arith.mulf %116, %115 : vector<16x384xf32>
    %cst_45 = arith.constant 5.000000e-01 : f32
    %118 = vector.broadcast %cst_45 : f32 to vector<16x384xf32>
    %119 = arith.addf %117, %118 : vector<16x384xf32>
    %120 = vector.extract_strided_slice %119 {offsets = [0, 0], sizes = [16, 128], strides = [1, 1]} : vector<16x384xf32> to vector<16x128xf32>
    %121 = vector.extract_strided_slice %119 {offsets = [0, 128], sizes = [16, 128], strides = [1, 1]} : vector<16x384xf32> to vector<16x128xf32>
    %122 = vector.extract_strided_slice %119 {offsets = [0, 256], sizes = [16, 128], strides = [1, 1]} : vector<16x384xf32> to vector<16x128xf32>
    %123 = vector.extract_strided_slice %111 {offsets = [0, 384], sizes = [16, 128], strides = [1, 1]} : vector<16x512xf32> to vector<16x128xf32>
    %124 = math.tanh %123 : vector<16x128xf32>
    %125 = arith.mulf %121, %103 : vector<16x128xf32>
    %126 = arith.mulf %120, %124 : vector<16x128xf32>
    %127 = arith.addf %125, %126 : vector<16x128xf32>
    %128 = math.tanh %127 : vector<16x128xf32>
    %129 = arith.mulf %122, %128 : vector<16x128xf32>
    %130 = arith.truncf %129 : vector<16x128xf32> to vector<16x128xbf16>
    %c80 = arith.constant 80 : index
    %c0_46 = arith.constant 0 : index
    %131 = vector.load %arg8[%c80, %c0_46] : memref<128x512xbf16, #tpu.memory_space<vmem>>, vector<16x512xbf16>
    %c0_47 = arith.constant 0 : index
    %c0_48 = arith.constant 0 : index
    %132 = vector.load %arg4[%c0_47, %c0_48] : memref<128x512xbf16, #tpu.memory_space<vmem>>, vector<128x512xbf16>
    %cst_49 = arith.constant dense<0.000000e+00> : vector<16x512xf32>
    %133 = tpu.matmul %130, %132, %cst_49 {dimension_numbers = #tpu.dot_dimension_numbers<[1], [0], [0], [1], [0, 0, 1, 1], [], []>} : vector<16x128xbf16>, vector<128x512xbf16>, vector<16x512xf32> -> vector<16x512xf32>
    %134 = arith.extf %131 : vector<16x512xbf16> to vector<16x512xf32>
    %135 = arith.addf %134, %133 : vector<16x512xf32>
    %136 = vector.extract_strided_slice %135 {offsets = [0, 0], sizes = [16, 384], strides = [1, 1]} : vector<16x512xf32> to vector<16x384xf32>
    %cst_50 = arith.constant 5.000000e-01 : f32
    %137 = vector.broadcast %cst_50 : f32 to vector<16x384xf32>
    %138 = arith.mulf %137, %136 : vector<16x384xf32>
    %139 = math.tanh %138 : vector<16x384xf32>
    %cst_51 = arith.constant 5.000000e-01 : f32
    %140 = vector.broadcast %cst_51 : f32 to vector<16x384xf32>
    %141 = arith.mulf %140, %139 : vector<16x384xf32>
    %cst_52 = arith.constant 5.000000e-01 : f32
    %142 = vector.broadcast %cst_52 : f32 to vector<16x384xf32>
    %143 = arith.addf %141, %142 : vector<16x384xf32>
    %144 = vector.extract_strided_slice %143 {offsets = [0, 0], sizes = [16, 128], strides = [1, 1]} : vector<16x384xf32> to vector<16x128xf32>
    %145 = vector.extract_strided_slice %143 {offsets = [0, 128], sizes = [16, 128], strides = [1, 1]} : vector<16x384xf32> to vector<16x128xf32>
    %146 = vector.extract_strided_slice %143 {offsets = [0, 256], sizes = [16, 128], strides = [1, 1]} : vector<16x384xf32> to vector<16x128xf32>
    %147 = vector.extract_strided_slice %135 {offsets = [0, 384], sizes = [16, 128], strides = [1, 1]} : vector<16x512xf32> to vector<16x128xf32>
    %148 = math.tanh %147 : vector<16x128xf32>
    %149 = arith.mulf %145, %127 : vector<16x128xf32>
    %150 = arith.mulf %144, %148 : vector<16x128xf32>
    %151 = arith.addf %149, %150 : vector<16x128xf32>
    %152 = math.tanh %151 : vector<16x128xf32>
    %153 = arith.mulf %146, %152 : vector<16x128xf32>
    %154 = arith.truncf %153 : vector<16x128xf32> to vector<16x128xbf16>
    %c96 = arith.constant 96 : index
    %c0_53 = arith.constant 0 : index
    %155 = vector.load %arg8[%c96, %c0_53] : memref<128x512xbf16, #tpu.memory_space<vmem>>, vector<16x512xbf16>
    %c0_54 = arith.constant 0 : index
    %c0_55 = arith.constant 0 : index
    %156 = vector.load %arg4[%c0_54, %c0_55] : memref<128x512xbf16, #tpu.memory_space<vmem>>, vector<128x512xbf16>
    %cst_56 = arith.constant dense<0.000000e+00> : vector<16x512xf32>
    %157 = tpu.matmul %154, %156, %cst_56 {dimension_numbers = #tpu.dot_dimension_numbers<[1], [0], [0], [1], [0, 0, 1, 1], [], []>} : vector<16x128xbf16>, vector<128x512xbf16>, vector<16x512xf32> -> vector<16x512xf32>
    %158 = arith.extf %155 : vector<16x512xbf16> to vector<16x512xf32>
    %159 = arith.addf %158, %157 : vector<16x512xf32>
    %160 = vector.extract_strided_slice %159 {offsets = [0, 0], sizes = [16, 384], strides = [1, 1]} : vector<16x512xf32> to vector<16x384xf32>
    %cst_57 = arith.constant 5.000000e-01 : f32
    %161 = vector.broadcast %cst_57 : f32 to vector<16x384xf32>
    %162 = arith.mulf %161, %160 : vector<16x384xf32>
    %163 = math.tanh %162 : vector<16x384xf32>
    %cst_58 = arith.constant 5.000000e-01 : f32
    %164 = vector.broadcast %cst_58 : f32 to vector<16x384xf32>
    %165 = arith.mulf %164, %163 : vector<16x384xf32>
    %cst_59 = arith.constant 5.000000e-01 : f32
    %166 = vector.broadcast %cst_59 : f32 to vector<16x384xf32>
    %167 = arith.addf %165, %166 : vector<16x384xf32>
    %168 = vector.extract_strided_slice %167 {offsets = [0, 0], sizes = [16, 128], strides = [1, 1]} : vector<16x384xf32> to vector<16x128xf32>
    %169 = vector.extract_strided_slice %167 {offsets = [0, 128], sizes = [16, 128], strides = [1, 1]} : vector<16x384xf32> to vector<16x128xf32>
    %170 = vector.extract_strided_slice %167 {offsets = [0, 256], sizes = [16, 128], strides = [1, 1]} : vector<16x384xf32> to vector<16x128xf32>
    %171 = vector.extract_strided_slice %159 {offsets = [0, 384], sizes = [16, 128], strides = [1, 1]} : vector<16x512xf32> to vector<16x128xf32>
    %172 = math.tanh %171 : vector<16x128xf32>
    %173 = arith.mulf %169, %151 : vector<16x128xf32>
    %174 = arith.mulf %168, %172 : vector<16x128xf32>
    %175 = arith.addf %173, %174 : vector<16x128xf32>
    %176 = math.tanh %175 : vector<16x128xf32>
    %177 = arith.mulf %170, %176 : vector<16x128xf32>
    %178 = arith.truncf %177 : vector<16x128xf32> to vector<16x128xbf16>
    %c112 = arith.constant 112 : index
    %c0_60 = arith.constant 0 : index
    %179 = vector.load %arg8[%c112, %c0_60] : memref<128x512xbf16, #tpu.memory_space<vmem>>, vector<16x512xbf16>
    %c0_61 = arith.constant 0 : index
    %c0_62 = arith.constant 0 : index
    %180 = vector.load %arg4[%c0_61, %c0_62] : memref<128x512xbf16, #tpu.memory_space<vmem>>, vector<128x512xbf16>
    %cst_63 = arith.constant dense<0.000000e+00> : vector<16x512xf32>
    %181 = tpu.matmul %178, %180, %cst_63 {dimension_numbers = #tpu.dot_dimension_numbers<[1], [0], [0], [1], [0, 0, 1, 1], [], []>} : vector<16x128xbf16>, vector<128x512xbf16>, vector<16x512xf32> -> vector<16x512xf32>
    %182 = arith.extf %179 : vector<16x512xbf16> to vector<16x512xf32>
    %183 = arith.addf %182, %181 : vector<16x512xf32>
    %184 = vector.extract_strided_slice %183 {offsets = [0, 0], sizes = [16, 384], strides = [1, 1]} : vector<16x512xf32> to vector<16x384xf32>
    %cst_64 = arith.constant 5.000000e-01 : f32
    %185 = vector.broadcast %cst_64 : f32 to vector<16x384xf32>
    %186 = arith.mulf %185, %184 : vector<16x384xf32>
    %187 = math.tanh %186 : vector<16x384xf32>
    %cst_65 = arith.constant 5.000000e-01 : f32
    %188 = vector.broadcast %cst_65 : f32 to vector<16x384xf32>
    %189 = arith.mulf %188, %187 : vector<16x384xf32>
    %cst_66 = arith.constant 5.000000e-01 : f32
    %190 = vector.broadcast %cst_66 : f32 to vector<16x384xf32>
    %191 = arith.addf %189, %190 : vector<16x384xf32>
    %192 = vector.extract_strided_slice %191 {offsets = [0, 0], sizes = [16, 128], strides = [1, 1]} : vector<16x384xf32> to vector<16x128xf32>
    %193 = vector.extract_strided_slice %191 {offsets = [0, 128], sizes = [16, 128], strides = [1, 1]} : vector<16x384xf32> to vector<16x128xf32>
    %194 = vector.extract_strided_slice %191 {offsets = [0, 256], sizes = [16, 128], strides = [1, 1]} : vector<16x384xf32> to vector<16x128xf32>
    %195 = vector.extract_strided_slice %183 {offsets = [0, 384], sizes = [16, 128], strides = [1, 1]} : vector<16x512xf32> to vector<16x128xf32>
    %196 = math.tanh %195 : vector<16x128xf32>
    %197 = arith.mulf %193, %175 : vector<16x128xf32>
    %198 = arith.mulf %192, %196 : vector<16x128xf32>
    %199 = arith.addf %197, %198 : vector<16x128xf32>
    %200 = math.tanh %199 : vector<16x128xf32>
    %201 = arith.mulf %194, %200 : vector<16x128xf32>
    %202 = arith.truncf %201 : vector<16x128xf32> to vector<16x128xbf16>
    %c0_67 = arith.constant 0 : index
    %c0_68 = arith.constant 0 : index
    %203 = vector.load %arg5[%c0_67, %c0_68] : memref<128x128xbf16, #tpu.memory_space<vmem>>, vector<128x128xbf16>
    %cst_69 = arith.constant dense<0.000000e+00> : vector<16x128xf32>
    %204 = tpu.matmul %202, %203, %cst_69 {dimension_numbers = #tpu.dot_dimension_numbers<[1], [0], [0], [1], [0, 0, 1, 1], [], []>} : vector<16x128xbf16>, vector<128x128xbf16>, vector<16x128xf32> -> vector<16x128xf32>
    %c0_70 = arith.constant 0 : index
    %c0_71 = arith.constant 0 : index
    %205 = vector.load %arg6[%c0_70, %c0_71] : memref<1x128xf32, #tpu.memory_space<vmem>>, vector<1x128xf32>
    %206 = vector.broadcast %205 : vector<1x128xf32> to vector<16x128xf32>
    %207 = arith.addf %204, %206 : vector<16x128xf32>
    %c0_72 = arith.constant 0 : index
    %c0_73 = arith.constant 0 : index
    %208 = vector.load %arg7[%c0_72, %c0_73] : memref<16x128xf32, #tpu.memory_space<vmem>>, vector<16x128xf32>
    tpu.vector_store %arg7[%c0_72, %c0_73], %207 {strides = array<i32>} : memref<16x128xf32, #tpu.memory_space<vmem>>, vector<16x128xf32>,
    return
  }
  func.func @transform_0(%arg0: i32) -> (i32, i32, i32) {
    %c0_i32 = arith.constant 0 : i32
    %c0_i32_0 = arith.constant 0 : i32
    %c0_i32_1 = arith.constant 0 : i32
    return %c0_i32, %arg0, %c0_i32_0 : i32, i32, i32
  }
  func.func @transform_1(%arg0: i32) -> (i32, i32) {
    %c0_i32 = arith.constant 0 : i32
    %c0_i32_0 = arith.constant 0 : i32
    %c0_i32_1 = arith.constant 0 : i32
    return %c0_i32, %c0_i32_0 : i32, i32
  }
  func.func @transform_2(%arg0: i32) -> (i32, i32) {
    %c0_i32 = arith.constant 0 : i32
    %c0_i32_0 = arith.constant 0 : i32
    %c0_i32_1 = arith.constant 0 : i32
    return %c0_i32, %c0_i32_0 : i32, i32
  }
  func.func @transform_3(%arg0: i32) -> (i32, i32) {
    %c0_i32 = arith.constant 0 : i32
    %c0_i32_0 = arith.constant 0 : i32
    %c0_i32_1 = arith.constant 0 : i32
    return %c0_i32, %c0_i32_0 : i32, i32
  }
  func.func @transform_4(%arg0: i32) -> (i32, i32) {
    %c0_i32 = arith.constant 0 : i32
    %c0_i32_0 = arith.constant 0 : i32
    %c0_i32_1 = arith.constant 0 : i32
    return %c0_i32, %c0_i32_0 : i32, i32
  }
  func.func @transform_5(%arg0: i32) -> (i32, i32) {
    %c0_i32 = arith.constant 0 : i32
    %c0_i32_0 = arith.constant 0 : i32
    %c0_i32_1 = arith.constant 0 : i32
    return %c0_i32, %c0_i32_0 : i32, i32
  }
  func.func @transform_6(%arg0: i32) -> (i32, i32) {
    %c0_i32 = arith.constant 0 : i32
    %c0_i32_0 = arith.constant 0 : i32
    return %arg0, %c0_i32 : i32, i32
  }
}

</mosaic_0001>

<llo_original>
// kernel: tpu_custom_call.1
$region0: #{tpu_custom_call.1}
  #allocation0 [shape = 'u32[]', space=smem, size = 0x4, offset = 0x4, fixed_abs, tag = 'smem constant byte address 0x4 - core index']
  #allocation1 [shape = 'u32[72,128]{1,0:T(1,128)}', space=vmem, size = 0x9000, scoped, tag = 'internal scratch']
  #allocation2 [shape = 'bf16[128,512]{1,0:T(8,128)(2,1)}', space=vmem, size = 0x20000, scoped, tag = 'scratch operand']
  %s0 = inlined_call_operand.hbm [shape: bf16[8,16,64], index: 0, kind: input, shape index: {}]
  %s1 = inlined_call_operand.hbm [shape: bf16[64,512], index: 1, kind: input, shape index: {}]
  %s2 = inlined_call_operand.hbm [shape: f32[1,512], index: 2, kind: input, shape index: {}]
  %s3 = inlined_call_operand.hbm [shape: bf16[128,512], index: 3, kind: input, shape index: {}]
  %s4 = inlined_call_operand.hbm [shape: bf16[128,128], index: 4, kind: input, shape index: {}]
  %s5 = inlined_call_operand.vmem [shape: f32[1,128], index: 5, kind: input, shape index: {}]
  %s6 = inlined_call_operand.hbm [shape: f32[16,128], index: 6, kind: output, shape index: {}]
  %s7 = sld [smem:[#allocation0]]
  $region54: #{tpu_custom_call.1} parent=0
    _
  %s9 = ssub.s32 1, %s7
  %s10 = scalar_select 0, %s9, %s7
  $region1: #{tpu_custom_call.1} parent=0
    #allocation3 [shape = 'u8[32768]{0}', space=vmem, size = 0x8000, scoped, tag = 'input window, operand 0, single buffered']
    #allocation4 [shape = 's32[1]{0}', space=sflag, size = 0x4, scoped, tag = 'scoped memory for tpu_custom_call.1']
    #allocation5 [shape = 's32[1]{0}', space=sflag, size = 0x4, scoped, tag = 'scoped memory for tpu_custom_call.1']
    #allocation6 [shape = 'u8[65536]{0}', space=vmem, size = 0x10000, scoped, tag = 'input window, operand 1, single buffered']
    #allocation7 [shape = 's32[1]{0}', space=sflag, size = 0x4, scoped, tag = 'scoped memory for tpu_custom_call.1']
    #allocation8 [shape = 'u8[2048]{0}', space=vmem, size = 0x800, scoped, tag = 'input window, operand 2, single buffered']
    #allocation9 [shape = 'u8[131072]{0}', space=vmem, size = 0x20000, scoped, tag = 'input window, operand 3, single buffered']
    #allocation10 [shape = 's32[1]{0}', space=sflag, size = 0x4, scoped, tag = 'scoped memory for tpu_custom_call.1']
    #allocation11 [shape = 'u8[32768]{0}', space=vmem, size = 0x8000, scoped, tag = 'input window, operand 4, single buffered']
    #allocation12 [shape = 'u8[8192]{0}', space=vmem, size = 0x2000, scoped, tag = 'output window, operand 0, single buffered']
    %11 = vsyncpa [#allocation4], 0
    %12 = vsyncpa [#allocation7], 0
    %13 = vsyncpa [#allocation10], 0
    %14 = vsyncpa [#allocation5], 0
    // Predicated region
    $region2: #{tpu_custom_call.1} parent=1 // pred_check
      _
    $region3: #{tpu_custom_call.1} parent=1 // pred_check_branch
      %16 = sbr.rel (0) target = $region5
    $region4: #{tpu_custom_call.1} parent=1 // pred_region
      %18 = vsyncadd [#allocation4], 0
      %s19 = sshll.u32 %s0, 4
      %s20 = int_to_ptr.hbm [resolvable:$true] %s19
      %s21 = sshll.u32 [#allocation3], 4
      %s22 = int_to_ptr.vmem [resolvable:$true] %s21
      %27 = dma.hbm_to_vmem [thread:$0]  %s20, 1024, %s22, [#allocation4], 64, 64, 4
    $region5: #{tpu_custom_call.1} parent=1 // pred_fallthru
      _
    // Predicated region
    $region6: #{tpu_custom_call.1} parent=1 // pred_check
      _
    $region7: #{tpu_custom_call.1} parent=1 // pred_check_branch
      %29 = sbr.rel (0) target = $region9
    $region8: #{tpu_custom_call.1} parent=1 // pred_region
      %31 = vsyncadd [#allocation7], 0
      %s32 = sshll.u32 %s1, 4
      %s33 = int_to_ptr.hbm [resolvable:$true] %s32
      %s34 = sshll.u32 [#allocation6], 4
      %s35 = int_to_ptr.vmem [resolvable:$true] %s34
      %40 = dma.hbm_to_vmem [thread:$0]  %s33, 2048, %s35, [#allocation7], 256, 256, 16
    $region9: #{tpu_custom_call.1} parent=1 // pred_fallthru
      _
    // Predicated region
    $region10: #{tpu_custom_call.1} parent=1 // pred_check
      _
    $region11: #{tpu_custom_call.1} parent=1 // pred_check_branch
      %42 = sbr.rel (0) target = $region13
    $region12: #{tpu_custom_call.1} parent=1 // pred_region
      %44 = vsyncadd [#allocation7], 0
      %s46 = sshll.u32 %s2, 4
      %s47 = int_to_ptr.hbm [resolvable:$true] %s46
      %s48 = sshll.u32 [#allocation8], 4
      %s49 = int_to_ptr.vmem [resolvable:$true] %s48
      %51 = dma.hbm_to_vmem [thread:$0]  %s47, 64, %s49, [#allocation7]
    $region13: #{tpu_custom_call.1} parent=1 // pred_fallthru
      _
    // Predicated region
    $region14: #{tpu_custom_call.1} parent=1 // pred_check
      _
    $region15: #{tpu_custom_call.1} parent=1 // pred_check_branch
      %53 = sbr.rel (0) target = $region17
    $region16: #{tpu_custom_call.1} parent=1 // pred_region
      %55 = vsyncadd [#allocation10], 0
      %s56 = sshll.u32 %s3, 4
      %s57 = int_to_ptr.hbm [resolvable:$true] %s56
      %s58 = sshll.u32 [#allocation9], 4
      %s59 = int_to_ptr.vmem [resolvable:$true] %s58
      %64 = dma.hbm_to_vmem [thread:$0]  %s57, 4096, %s59, [#allocation10], 256, 256, 16
    $region17: #{tpu_custom_call.1} parent=1 // pred_fallthru
      _
    // Predicated region
    $region18: #{tpu_custom_call.1} parent=1 // pred_check
      _
    $region19: #{tpu_custom_call.1} parent=1 // pred_check_branch
      %66 = sbr.rel (0) target = $region21
    $region20: #{tpu_custom_call.1} parent=1 // pred_region
      %68 = vsyncadd [#allocation10], 0
      %s69 = sshll.u32 %s4, 4
      %s70 = int_to_ptr.hbm [resolvable:$true] %s69
      %s71 = sshll.u32 [#allocation11], 4
      %s72 = int_to_ptr.vmem [resolvable:$true] %s71
      %77 = dma.hbm_to_vmem [thread:$0]  %s70, 1024, %s72, [#allocation10], 64, 64, 4
    $region21: #{tpu_custom_call.1} parent=1 // pred_fallthru
      _
    // Predicated region
    $region22: #{tpu_custom_call.1} parent=1 // pred_check
      _
    $region23: #{tpu_custom_call.1} parent=1 // pred_check_branch
      %79 = sbr.rel (0) target = $region25
    $region24: #{tpu_custom_call.1} parent=1 // pred_region
      _
    $region25: #{tpu_custom_call.1} parent=1 // pred_fallthru
      _
    // Predicated region
    $region26: #{tpu_custom_call.1} parent=1 // pred_check
      _
    $region27: #{tpu_custom_call.1} parent=1 // pred_check_branch
      %81 = sbr.rel (0) target = $region29
    $region28: #{tpu_custom_call.1} parent=1 // pred_region
      %83 = dma.done [#allocation4], 1024
    $region29: #{tpu_custom_call.1} parent=1 // pred_fallthru
      _
    // Predicated region
    $region30: #{tpu_custom_call.1} parent=1 // pred_check
      _
    $region31: #{tpu_custom_call.1} parent=1 // pred_check_branch
      %85 = sbr.rel (0) target = $region33
    $region32: #{tpu_custom_call.1} parent=1 // pred_region
      %87 = dma.done [#allocation7], 2048
    $region33: #{tpu_custom_call.1} parent=1 // pred_fallthru
      _
    // Predicated region
    $region34: #{tpu_custom_call.1} parent=1 // pred_check
      _
    $region35: #{tpu_custom_call.1} parent=1 // pred_check_branch
      %89 = sbr.rel (0) target = $region37
    $region36: #{tpu_custom_call.1} parent=1 // pred_region
      %91 = dma.done [#allocation7], 64
    $region37: #{tpu_custom_call.1} parent=1 // pred_fallthru
      _
    // Predicated region
    $region38: #{tpu_custom_call.1} parent=1 // pred_check
      _
    $region39: #{tpu_custom_call.1} parent=1 // pred_check_branch
      %93 = sbr.rel (0) target = $region41
    $region40: #{tpu_custom_call.1} parent=1 // pred_region
      %95 = dma.done [#allocation10], 4096
    $region41: #{tpu_custom_call.1} parent=1 // pred_fallthru
      _
    // Predicated region
    $region42: #{tpu_custom_call.1} parent=1 // pred_check
      _
    $region43: #{tpu_custom_call.1} parent=1 // pred_check_branch
      %97 = sbr.rel (0) target = $region45
    $region44: #{tpu_custom_call.1} parent=1 // pred_region
      %99 = dma.done [#allocation10], 1024
    $region45: #{tpu_custom_call.1} parent=1 // pred_fallthru
      _
    %v101 = vld [vmem:[#allocation3] sm:$0xf]
    %v102 = vld [vmem:[#allocation3 + $0x4] sm:$0xf]
    %v103 = vld [vmem:[#allocation3 + $0x8] sm:$0xf]
    %v104 = vld [vmem:[#allocation3 + $0xc] sm:$0xf]
    %v105 = vld [vmem:[#allocation3 + $0x10] sm:$0xf]
    %v106 = vld [vmem:[#allocation3 + $0x14] sm:$0xf]
    %v107 = vld [vmem:[#allocation3 + $0x18] sm:$0xf]
    %v108 = vld [vmem:[#allocation3 + $0x1c] sm:$0xf]
    %v109 = vld [vmem:[#allocation3 + $0x20] sm:$0xf]
    %v110 = vld [vmem:[#allocation3 + $0x24] sm:$0xf]
    %v111 = vld [vmem:[#allocation3 + $0x28] sm:$0xf]
    %v112 = vld [vmem:[#allocation3 + $0x2c] sm:$0xf]
    %v113 = vld [vmem:[#allocation3 + $0x30] sm:$0xf]
    %v114 = vld [vmem:[#allocation3 + $0x34] sm:$0xf]
    %v115 = vld [vmem:[#allocation3 + $0x38] sm:$0xf]
    %v116 = vld [vmem:[#allocation3 + $0x3c] sm:$0xf]
    %v117 = vld [vmem:[#allocation6] sm:$0xff]
    %v118 = vld [vmem:[#allocation6 + $0x8] sm:$0xff]
    %v119 = vld [vmem:[#allocation6 + $0x10] sm:$0xff]
    %v120 = vld [vmem:[#allocation6 + $0x18] sm:$0xff]
    %v121 = vld [vmem:[#allocation6 + $0x20] sm:$0xff]
    %v122 = vld [vmem:[#allocation6 + $0x28] sm:$0xff]
    %v123 = vld [vmem:[#allocation6 + $0x30] sm:$0xff]
    %v124 = vld [vmem:[#allocation6 + $0x38] sm:$0xff]
    %v125 = vld [vmem:[#allocation6 + $0x40] sm:$0xff]
    %v126 = vld [vmem:[#allocation6 + $0x48] sm:$0xff]
    %v127 = vld [vmem:[#allocation6 + $0x50] sm:$0xff]
    %v128 = vld [vmem:[#allocation6 + $0x58] sm:$0xff]
    %v129 = vld [vmem:[#allocation6 + $0x60] sm:$0xff]
    %v130 = vld [vmem:[#allocation6 + $0x68] sm:$0xff]
    %v131 = vld [vmem:[#allocation6 + $0x70] sm:$0xff]
    %v132 = vld [vmem:[#allocation6 + $0x78] sm:$0xff]
    %v133 = vld [vmem:[#allocation8] sm:$0xf]
    %v135 = vperm.slane %v133, 0
    %v136 = vperm.slane %v133, 1
    %v137 = vperm.slane %v133, 2
    %v138 = vperm.slane %v133, 3
    %v159 = vunpack.c.l.b16 %v101
    %v160 = vunpack.c.l.b16 %v102
    %v161 = vunpack.c.l.b16 %v103
    %v162 = vunpack.c.l.b16 %v104
    %v163 = vunpack.c.l.b16 %v105
    %v164 = vunpack.c.l.b16 %v106
    %v165 = vunpack.c.l.b16 %v107
    %v166 = vunpack.c.l.b16 %v108
    %v167 = vunpack.c.l.b16 %v109
    %v168 = vunpack.c.l.b16 %v110
    %v169 = vunpack.c.l.b16 %v111
    %v170 = vunpack.c.l.b16 %v112
    %v171 = vunpack.c.l.b16 %v113
    %v172 = vunpack.c.l.b16 %v114
    %v173 = vunpack.c.l.b16 %v115
    %v174 = vunpack.c.l.b16 %v116
    %v175 = vpack.c.b16 %v160, %v159
    %v176 = vpack.c.b16 %v162, %v161
    %v177 = vpack.c.b16 %v164, %v163
    %v178 = vpack.c.b16 %v166, %v165
    %v179 = vpack.c.b16 %v168, %v167
    %v180 = vpack.c.b16 %v170, %v169
    %v181 = vpack.c.b16 %v172, %v171
    %v182 = vpack.c.b16 %v174, %v173
    %v199 = vunpack.c.l.b16 %v117
    %v200 = vunpack.c.h.b16 %v117
    %v201 = vunpack.c.l.b16 %v118
    %v202 = vunpack.c.h.b16 %v118
    %v203 = vunpack.c.l.b16 %v119
    %v204 = vunpack.c.h.b16 %v119
    %v205 = vunpack.c.l.b16 %v120
    %v206 = vunpack.c.h.b16 %v120
    %v207 = vunpack.c.l.b16 %v121
    %v208 = vunpack.c.h.b16 %v121
    %v209 = vunpack.c.l.b16 %v122
    %v210 = vunpack.c.h.b16 %v122
    %v211 = vunpack.c.l.b16 %v123
    %v212 = vunpack.c.h.b16 %v123
    %v213 = vunpack.c.l.b16 %v124
    %v214 = vunpack.c.h.b16 %v124
    %v215 = vunpack.c.l.b16 %v125
    %v216 = vunpack.c.h.b16 %v125
    %v217 = vunpack.c.l.b16 %v126
    %v218 = vunpack.c.h.b16 %v126
    %v219 = vunpack.c.l.b16 %v127
    %v220 = vunpack.c.h.b16 %v127
    %v221 = vunpack.c.l.b16 %v128
    %v222 = vunpack.c.h.b16 %v128
    %v223 = vunpack.c.l.b16 %v129
    %v224 = vunpack.c.h.b16 %v129
    %v225 = vunpack.c.l.b16 %v130
    %v226 = vunpack.c.h.b16 %v130
    %v227 = vunpack.c.l.b16 %v131
    %v228 = vunpack.c.h.b16 %v131
    %v229 = vunpack.c.l.b16 %v132
    %v230 = vunpack.c.h.b16 %v132
    %v231 = vpack.c.b16 %v203, %v199
    %v232 = vpack.c.b16 %v204, %v200
    %v233 = vpack.c.b16 %v205, %v201
    %v234 = vpack.c.b16 %v206, %v202
    %v235 = vpack.c.b16 %v211, %v207
    %v236 = vpack.c.b16 %v212, %v208
    %v237 = vpack.c.b16 %v213, %v209
    %v238 = vpack.c.b16 %v214, %v210
    %v239 = vpack.c.b16 %v219, %v215
    %v240 = vpack.c.b16 %v220, %v216
    %v241 = vpack.c.b16 %v221, %v217
    %v242 = vpack.c.b16 %v222, %v218
    %v243 = vpack.c.b16 %v227, %v223
    %v244 = vpack.c.b16 %v228, %v224
    %v245 = vpack.c.b16 %v229, %v225
    %v246 = vpack.c.b16 %v230, %v226
    %vm263 = vcmask 523264
    %v265 = vsel %vm263, %v175, 0
    %v268 = vsel %vm263, %v176, 0
    %v271 = vsel %vm263, %v177, 0
    %v274 = vsel %vm263, %v178, 0
    %v277 = vsel %vm263, %v179, 0
    %v280 = vsel %vm263, %v180, 0
    %v283 = vsel %vm263, %v181, 0
    %v286 = vsel %vm263, %v182, 0
    %288 = vmatpush.bf16.msra.mxu0 0
    %289 = vmatpush.bf16.msra.mxu0 0
    %290 = vmatpush.bf16.msra.mxu0 0
    %291 = vmatpush.bf16.msra.mxu0 0
    %292 = vmatpush.bf16.msra.mxu0 %v243
    %293 = vmatpush.bf16.msra.mxu0 %v239
    %294 = vmatpush.bf16.msra.mxu0 %v235
    %295 = vmatpush.bf16.msra.mxu0 %v231
    %296 = vmatmul.bf16.gmra.mxu0 %v265
    %v297 = vpop.f32.mrf.mxu0
    %v298 = vadd.f32 %v135, %v297
    %v299 = vpop.f32.mrf.mxu0
    %v300 = vadd.f32 %v135, %v299
    %301 = vmatmul.bf16.gmra.mxu0 %v268
    %v302 = vpop.f32.mrf.mxu0
    %v303 = vadd.f32 %v135, %v302
    %v304 = vpop.f32.mrf.mxu0
    %v305 = vadd.f32 %v135, %v304
    %306 = vmatmul.bf16.gmra.mxu0 %v271
    %v307 = vpop.f32.mrf.mxu0
    %v308 = vadd.f32 %v135, %v307
    %v309 = vpop.f32.mrf.mxu0
    %v310 = vadd.f32 %v135, %v309
    %311 = vmatmul.bf16.gmra.mxu0 %v274
    %v312 = vpop.f32.mrf.mxu0
    %v313 = vadd.f32 %v135, %v312
    %v314 = vpop.f32.mrf.mxu0
    %v315 = vadd.f32 %v135, %v314
    %316 = vmatmul.bf16.gmra.mxu0 %v277
    %v317 = vpop.f32.mrf.mxu0
    %v318 = vadd.f32 %v135, %v317
    %v319 = vpop.f32.mrf.mxu0
    %v320 = vadd.f32 %v135, %v319
    %321 = vmatmul.bf16.gmra.mxu0 %v280
    %v322 = vpop.f32.mrf.mxu0
    %v323 = vadd.f32 %v135, %v322
    %v324 = vpop.f32.mrf.mxu0
    %v325 = vadd.f32 %v135, %v324
    %326 = vmatmul.bf16.gmra.mxu0 %v283
    %v327 = vpop.f32.mrf.mxu0
    %v328 = vadd.f32 %v135, %v327
    %v329 = vpop.f32.mrf.mxu0
    %v330 = vadd.f32 %v135, %v329
    %331 = vmatmul.bf16.gmra.mxu0 %v286
    %v332 = vpop.f32.mrf.mxu0
    %v333 = vadd.f32 %v135, %v332
    %v334 = vpop.f32.mrf.mxu0
    %v335 = vadd.f32 %v135, %v334
    %336 = vdwg.mxu0
    %337 = vmatpush.bf16.msra.mxu0 0
    %338 = vmatpush.bf16.msra.mxu0 0
    %339 = vmatpush.bf16.msra.mxu0 0
    %340 = vmatpush.bf16.msra.mxu0 0
    %341 = vmatpush.bf16.msra.mxu0 %v244
    %342 = vmatpush.bf16.msra.mxu0 %v240
    %343 = vmatpush.bf16.msra.mxu0 %v236
    %344 = vmatpush.bf16.msra.mxu0 %v232
    %345 = vmatmul.bf16.gmra.mxu0 %v265
    %v346 = vpop.f32.mrf.mxu0
    %v347 = vadd.f32 %v136, %v346
    %v348 = vpop.f32.mrf.mxu0
    %v349 = vadd.f32 %v136, %v348
    %350 = vmatmul.bf16.gmra.mxu0 %v268
    %v351 = vpop.f32.mrf.mxu0
    %v352 = vadd.f32 %v136, %v351
    %v353 = vpop.f32.mrf.mxu0
    %v354 = vadd.f32 %v136, %v353
    %355 = vmatmul.bf16.gmra.mxu0 %v271
    %v356 = vpop.f32.mrf.mxu0
    %v357 = vadd.f32 %v136, %v356
    %v358 = vpop.f32.mrf.mxu0
    %v359 = vadd.f32 %v136, %v358
    %360 = vmatmul.bf16.gmra.mxu0 %v274
    %v361 = vpop.f32.mrf.mxu0
    %v362 = vadd.f32 %v136, %v361
    %v363 = vpop.f32.mrf.mxu0
    %v364 = vadd.f32 %v136, %v363
    %365 = vmatmul.bf16.gmra.mxu0 %v277
    %v366 = vpop.f32.mrf.mxu0
    %v367 = vadd.f32 %v136, %v366
    %v368 = vpop.f32.mrf.mxu0
    %v369 = vadd.f32 %v136, %v368
    %370 = vmatmul.bf16.gmra.mxu0 %v280
    %v371 = vpop.f32.mrf.mxu0
    %v372 = vadd.f32 %v136, %v371
    %v373 = vpop.f32.mrf.mxu0
    %v374 = vadd.f32 %v136, %v373
    %375 = vmatmul.bf16.gmra.mxu0 %v283
    %v376 = vpop.f32.mrf.mxu0
    %v377 = vadd.f32 %v136, %v376
    %v378 = vpop.f32.mrf.mxu0
    %v379 = vadd.f32 %v136, %v378
    %380 = vmatmul.bf16.gmra.mxu0 %v286
    %v381 = vpop.f32.mrf.mxu0
    %v382 = vadd.f32 %v136, %v381
    %v383 = vpop.f32.mrf.mxu0
    %v384 = vadd.f32 %v136, %v383
    %385 = vdwg.mxu0
    %386 = vmatpush.bf16.msra.mxu0 0
    %387 = vmatpush.bf16.msra.mxu0 0
    %388 = vmatpush.bf16.msra.mxu0 0
    %389 = vmatpush.bf16.msra.mxu0 0
    %390 = vmatpush.bf16.msra.mxu0 %v245
    %391 = vmatpush.bf16.msra.mxu0 %v241
    %392 = vmatpush.bf16.msra.mxu0 %v237
    %393 = vmatpush.bf16.msra.mxu0 %v233
    %394 = vmatmul.bf16.gmra.mxu0 %v265
    %v395 = vpop.f32.mrf.mxu0
    %v396 = vadd.f32 %v137, %v395
    %v397 = vpop.f32.mrf.mxu0
    %v398 = vadd.f32 %v137, %v397
    %399 = vmatmul.bf16.gmra.mxu0 %v268
    %v400 = vpop.f32.mrf.mxu0
    %v401 = vadd.f32 %v137, %v400
    %v402 = vpop.f32.mrf.mxu0
    %v403 = vadd.f32 %v137, %v402
    %404 = vmatmul.bf16.gmra.mxu0 %v271
    %v405 = vpop.f32.mrf.mxu0
    %v406 = vadd.f32 %v137, %v405
    %v407 = vpop.f32.mrf.mxu0
    %v408 = vadd.f32 %v137, %v407
    %409 = vmatmul.bf16.gmra.mxu0 %v274
    %v410 = vpop.f32.mrf.mxu0
    %v411 = vadd.f32 %v137, %v410
    %v412 = vpop.f32.mrf.mxu0
    %v413 = vadd.f32 %v137, %v412
    %414 = vmatmul.bf16.gmra.mxu0 %v277
    %v415 = vpop.f32.mrf.mxu0
    %v416 = vadd.f32 %v137, %v415
    %v417 = vpop.f32.mrf.mxu0
    %v418 = vadd.f32 %v137, %v417
    %419 = vmatmul.bf16.gmra.mxu0 %v280
    %v420 = vpop.f32.mrf.mxu0
    %v421 = vadd.f32 %v137, %v420
    %v422 = vpop.f32.mrf.mxu0
    %v423 = vadd.f32 %v137, %v422
    %424 = vmatmul.bf16.gmra.mxu0 %v283
    %v425 = vpop.f32.mrf.mxu0
    %v426 = vadd.f32 %v137, %v425
    %v427 = vpop.f32.mrf.mxu0
    %v428 = vadd.f32 %v137, %v427
    %429 = vmatmul.bf16.gmra.mxu0 %v286
    %v430 = vpop.f32.mrf.mxu0
    %v431 = vadd.f32 %v137, %v430
    %v432 = vpop.f32.mrf.mxu0
    %v433 = vadd.f32 %v137, %v432
    %434 = vdwg.mxu0
    %435 = vmatpush.bf16.msra.mxu0 0
    %436 = vmatpush.bf16.msra.mxu0 0
    %437 = vmatpush.bf16.msra.mxu0 0
    %438 = vmatpush.bf16.msra.mxu0 0
    %439 = vmatpush.bf16.msra.mxu0 %v246
    %440 = vmatpush.bf16.msra.mxu0 %v242
    %441 = vmatpush.bf16.msra.mxu0 %v238
    %442 = vmatpush.bf16.msra.mxu0 %v234
    %443 = vmatmul.bf16.gmra.mxu0 %v265
    %v444 = vpop.f32.mrf.mxu0
    %v445 = vadd.f32 %v138, %v444
    %v446 = vpop.f32.mrf.mxu0
    %v447 = vadd.f32 %v138, %v446
    %448 = vmatmul.bf16.gmra.mxu0 %v268
    %v449 = vpop.f32.mrf.mxu0
    %v450 = vadd.f32 %v138, %v449
    %v451 = vpop.f32.mrf.mxu0
    %v452 = vadd.f32 %v138, %v451
    %453 = vmatmul.bf16.gmra.mxu0 %v271
    %v454 = vpop.f32.mrf.mxu0
    %v455 = vadd.f32 %v138, %v454
    %v456 = vpop.f32.mrf.mxu0
    %v457 = vadd.f32 %v138, %v456
    %458 = vmatmul.bf16.gmra.mxu0 %v274
    %v459 = vpop.f32.mrf.mxu0
    %v460 = vadd.f32 %v138, %v459
    %v461 = vpop.f32.mrf.mxu0
    %v462 = vadd.f32 %v138, %v461
    %463 = vmatmul.bf16.gmra.mxu0 %v277
    %v464 = vpop.f32.mrf.mxu0
    %v465 = vadd.f32 %v138, %v464
    %v466 = vpop.f32.mrf.mxu0
    %v467 = vadd.f32 %v138, %v466
    %468 = vmatmul.bf16.gmra.mxu0 %v280
    %v469 = vpop.f32.mrf.mxu0
    %v470 = vadd.f32 %v138, %v469
    %v471 = vpop.f32.mrf.mxu0
    %v472 = vadd.f32 %v138, %v471
    %473 = vmatmul.bf16.gmra.mxu0 %v283
    %v474 = vpop.f32.mrf.mxu0
    %v475 = vadd.f32 %v138, %v474
    %v476 = vpop.f32.mrf.mxu0
    %v477 = vadd.f32 %v138, %v476
    %478 = vmatmul.bf16.gmra.mxu0 %v286
    %v479 = vpop.f32.mrf.mxu0
    %v480 = vadd.f32 %v138, %v479
    %v481 = vpop.f32.mrf.mxu0
    %v482 = vadd.f32 %v138, %v481
    %483 = vdwg.mxu0
    %v484 = vpack.c.bf16 %v347, %v298
    %v485 = vpack.c.bf16 %v445, %v396
    %v486 = vpack.c.bf16 %v349, %v300
    %v487 = vpack.c.bf16 %v447, %v398
    %v488 = vpack.c.bf16 %v352, %v303
    %v489 = vpack.c.bf16 %v450, %v401
    %v490 = vpack.c.bf16 %v354, %v305
    %v491 = vpack.c.bf16 %v452, %v403
    %v492 = vpack.c.bf16 %v357, %v308
    %v493 = vpack.c.bf16 %v455, %v406
    %v494 = vpack.c.bf16 %v359, %v310
    %v495 = vpack.c.bf16 %v457, %v408
    %v496 = vpack.c.bf16 %v362, %v313
    %v497 = vpack.c.bf16 %v460, %v411
    %v498 = vpack.c.bf16 %v364, %v315
    %v499 = vpack.c.bf16 %v462, %v413
    %v500 = vpack.c.bf16 %v367, %v318
    %v501 = vpack.c.bf16 %v465, %v416
    %v502 = vpack.c.bf16 %v369, %v320
    %v503 = vpack.c.bf16 %v467, %v418
    %v504 = vpack.c.bf16 %v372, %v323
    %v505 = vpack.c.bf16 %v470, %v421
    %v506 = vpack.c.bf16 %v374, %v325
    %v507 = vpack.c.bf16 %v472, %v423
    %v508 = vpack.c.bf16 %v377, %v328
    %v509 = vpack.c.bf16 %v475, %v426
    %v510 = vpack.c.bf16 %v379, %v330
    %v511 = vpack.c.bf16 %v477, %v428
    %v512 = vpack.c.bf16 %v382, %v333
    %v513 = vpack.c.bf16 %v480, %v431
    %v514 = vpack.c.bf16 %v384, %v335
    %v515 = vpack.c.bf16 %v482, %v433
    %516 = vst [vmem:[#allocation2] sm:$0xff] %v484
    %517 = vst [vmem:[#allocation2 + $0x8] sm:$0xff] %v485
    %518 = vst [vmem:[#allocation2 + $0x10] sm:$0xff] %v486
    %519 = vst [vmem:[#allocation2 + $0x18] sm:$0xff] %v487
    %520 = vst [vmem:[#allocation2 + $0x20] sm:$0xff] %v488
    %521 = vst [vmem:[#allocation2 + $0x28] sm:$0xff] %v489
    %522 = vst [vmem:[#allocation2 + $0x30] sm:$0xff] %v490
    %523 = vst [vmem:[#allocation2 + $0x38] sm:$0xff] %v491
    %524 = vst [vmem:[#allocation2 + $0x40] sm:$0xff] %v492
    %525 = vst [vmem:[#allocation2 + $0x48] sm:$0xff] %v493
    %526 = vst [vmem:[#allocation2 + $0x50] sm:$0xff] %v494
    %527 = vst [vmem:[#allocation2 + $0x58] sm:$0xff] %v495
    %528 = vst [vmem:[#allocation2 + $0x60] sm:$0xff] %v496
    %529 = vst [vmem:[#allocation2 + $0x68] sm:$0xff] %v497
    %530 = vst [vmem:[#allocation2 + $0x70] sm:$0xff] %v498
    %531 = vst [vmem:[#allocation2 + $0x78] sm:$0xff] %v499
    %532 = vst [vmem:[#allocation2 + $0x80] sm:$0xff] %v500
    %533 = vst [vmem:[#allocation2 + $0x88] sm:$0xff] %v501
    %534 = vst [vmem:[#allocation2 + $0x90] sm:$0xff] %v502
    %535 = vst [vmem:[#allocation2 + $0x98] sm:$0xff] %v503
    %536 = vst [vmem:[#allocation2 + $0xa0] sm:$0xff] %v504
    %537 = vst [vmem:[#allocation2 + $0xa8] sm:$0xff] %v505
    %538 = vst [vmem:[#allocation2 + $0xb0] sm:$0xff] %v506
    %539 = vst [vmem:[#allocation2 + $0xb8] sm:$0xff] %v507
    %540 = vst [vmem:[#allocation2 + $0xc0] sm:$0xff] %v508
    %541 = vst [vmem:[#allocation2 + $0xc8] sm:$0xff] %v509
    %542 = vst [vmem:[#allocation2 + $0xd0] sm:$0xff] %v510
    %543 = vst [vmem:[#allocation2 + $0xd8] sm:$0xff] %v511
    %544 = vst [vmem:[#allocation2 + $0xe0] sm:$0xff] %v512
    %545 = vst [vmem:[#allocation2 + $0xe8] sm:$0xff] %v513
    %546 = vst [vmem:[#allocation2 + $0xf0] sm:$0xff] %v514
    %547 = vst [vmem:[#allocation2 + $0xf8] sm:$0xff] %v515
    %v548 = vld [vmem:[#allocation2] sm:$0xff]
    %v549 = vld [vmem:[#allocation2 + $0x8] sm:$0xff]
    %v550 = vld [vmem:[#allocation2 + $0x10] sm:$0xff]
    %v551 = vld [vmem:[#allocation2 + $0x18] sm:$0xff]
    %v552 = vld [vmem:[#allocation9] sm:$0xff]
    %v553 = vld [vmem:[#allocation9 + $0x8] sm:$0xff]
    %v554 = vld [vmem:[#allocation9 + $0x10] sm:$0xff]
    %v555 = vld [vmem:[#allocation9 + $0x18] sm:$0xff]
    %v556 = vld [vmem:[#allocation9 + $0x20] sm:$0xff]
    %v557 = vld [vmem:[#allocation9 + $0x28] sm:$0xff]
    %v558 = vld [vmem:[#allocation9 + $0x30] sm:$0xff]
    %v559 = vld [vmem:[#allocation9 + $0x38] sm:$0xff]
    %v560 = vld [vmem:[#allocation9 + $0x40] sm:$0xff]
    %v561 = vld [vmem:[#allocation9 + $0x48] sm:$0xff]
    %v562 = vld [vmem:[#allocation9 + $0x50] sm:$0xff]
    %v563 = vld [vmem:[#allocation9 + $0x58] sm:$0xff]
    %v564 = vld [vmem:[#allocation9 + $0x60] sm:$0xff]
    %v565 = vld [vmem:[#allocation9 + $0x68] sm:$0xff]
    %v566 = vld [vmem:[#allocation9 + $0x70] sm:$0xff]
    %v567 = vld [vmem:[#allocation9 + $0x78] sm:$0xff]
    %v568 = vld [vmem:[#allocation9 + $0x80] sm:$0xff]
    %v569 = vld [vmem:[#allocation9 + $0x88] sm:$0xff]
    %v570 = vld [vmem:[#allocation9 + $0x90] sm:$0xff]
    %v571 = vld [vmem:[#allocation9 + $0x98] sm:$0xff]
    %v572 = vld [vmem:[#allocation9 + $0xa0] sm:$0xff]
    %v573 = vld [vmem:[#allocation9 + $0xa8] sm:$0xff]
    %v574 = vld [vmem:[#allocation9 + $0xb0] sm:$0xff]
    %v575 = vld [vmem:[#allocation9 + $0xb8] sm:$0xff]
    %v576 = vld [vmem:[#allocation9 + $0xc0] sm:$0xff]
    %v577 = vld [vmem:[#allocation9 + $0xc8] sm:$0xff]
    %v578 = vld [vmem:[#allocation9 + $0xd0] sm:$0xff]
    %v579 = vld [vmem:[#allocation9 + $0xd8] sm:$0xff]
    %v580 = vld [vmem:[#allocation9 + $0xe0] sm:$0xff]
    %v581 = vld [vmem:[#allocation9 + $0xe8] sm:$0xff]
    %v582 = vld [vmem:[#allocation9 + $0xf0] sm:$0xff]
    %v583 = vld [vmem:[#allocation9 + $0xf8] sm:$0xff]
    %v616 = vunpack.c.l.b16 %v552
    %v617 = vunpack.c.h.b16 %v552
    %v618 = vunpack.c.l.b16 %v553
    %v619 = vunpack.c.h.b16 %v553
    %v620 = vunpack.c.l.b16 %v554
    %v621 = vunpack.c.h.b16 %v554
    %v622 = vunpack.c.l.b16 %v555
    %v623 = vunpack.c.h.b16 %v555
    %v624 = vunpack.c.l.b16 %v556
    %v625 = vunpack.c.h.b16 %v556
    %v626 = vunpack.c.l.b16 %v557
    %v627 = vunpack.c.h.b16 %v557
    %v628 = vunpack.c.l.b16 %v558
    %v629 = vunpack.c.h.b16 %v558
    %v630 = vunpack.c.l.b16 %v559
    %v631 = vunpack.c.h.b16 %v559
    %v632 = vunpack.c.l.b16 %v560
    %v633 = vunpack.c.h.b16 %v560
    %v634 = vunpack.c.l.b16 %v561
    %v635 = vunpack.c.h.b16 %v561
    %v636 = vunpack.c.l.b16 %v562
    %v637 = vunpack.c.h.b16 %v562
    %v638 = vunpack.c.l.b16 %v563
    %v639 = vunpack.c.h.b16 %v563
    %v640 = vunpack.c.l.b16 %v564
    %v641 = vunpack.c.h.b16 %v564
    %v642 = vunpack.c.l.b16 %v565
    %v643 = vunpack.c.h.b16 %v565
    %v644 = vunpack.c.l.b16 %v566
    %v645 = vunpack.c.h.b16 %v566
    %v646 = vunpack.c.l.b16 %v567
    %v647 = vunpack.c.h.b16 %v567
    %v648 = vunpack.c.l.b16 %v568
    %v649 = vunpack.c.h.b16 %v568
    %v650 = vunpack.c.l.b16 %v569
    %v651 = vunpack.c.h.b16 %v569
    %v652 = vunpack.c.l.b16 %v570
    %v653 = vunpack.c.h.b16 %v570
    %v654 = vunpack.c.l.b16 %v571
    %v655 = vunpack.c.h.b16 %v571
    %v656 = vunpack.c.l.b16 %v572
    %v657 = vunpack.c.h.b16 %v572
    %v658 = vunpack.c.l.b16 %v573
    %v659 = vunpack.c.h.b16 %v573
    %v660 = vunpack.c.l.b16 %v574
    %v661 = vunpack.c.h.b16 %v574
    %v662 = vunpack.c.l.b16 %v575
    %v663 = vunpack.c.h.b16 %v575
    %v664 = vunpack.c.l.b16 %v576
    %v665 = vunpack.c.h.b16 %v576
    %v666 = vunpack.c.l.b16 %v577
    %v667 = vunpack.c.h.b16 %v577
    %v668 = vunpack.c.l.b16 %v578
    %v669 = vunpack.c.h.b16 %v578
    %v670 = vunpack.c.l.b16 %v579
    %v671 = vunpack.c.h.b16 %v579
    %v672 = vunpack.c.l.b16 %v580
    %v673 = vunpack.c.h.b16 %v580
    %v674 = vunpack.c.l.b16 %v581
    %v675 = vunpack.c.h.b16 %v581
    %v676 = vunpack.c.l.b16 %v582
    %v677 = vunpack.c.h.b16 %v582
    %v678 = vunpack.c.l.b16 %v583
    %v679 = vunpack.c.h.b16 %v583
    %v680 = vpack.c.b16 %v620, %v616
    %v681 = vpack.c.b16 %v621, %v617
    %v682 = vpack.c.b16 %v622, %v618
    %v683 = vpack.c.b16 %v623, %v619
    %v684 = vpack.c.b16 %v628, %v624
    %v685 = vpack.c.b16 %v629, %v625
    %v686 = vpack.c.b16 %v630, %v626
    %v687 = vpack.c.b16 %v631, %v627
    %v688 = vpack.c.b16 %v636, %v632
    %v689 = vpack.c.b16 %v637, %v633
    %v690 = vpack.c.b16 %v638, %v634
    %v691 = vpack.c.b16 %v639, %v635
    %v692 = vpack.c.b16 %v644, %v640
    %v693 = vpack.c.b16 %v645, %v641
    %v694 = vpack.c.b16 %v646, %v642
    %v695 = vpack.c.b16 %v647, %v643
    %v696 = vpack.c.b16 %v652, %v648
    %v697 = vpack.c.b16 %v653, %v649
    %v698 = vpack.c.b16 %v654, %v650
    %v699 = vpack.c.b16 %v655, %v651
    %v700 = vpack.c.b16 %v660, %v656
    %v701 = vpack.c.b16 %v661, %v657
    %v702 = vpack.c.b16 %v662, %v658
    %v703 = vpack.c.b16 %v663, %v659
    %v704 = vpack.c.b16 %v668, %v664
    %v705 = vpack.c.b16 %v669, %v665
    %v706 = vpack.c.b16 %v670, %v666
    %v707 = vpack.c.b16 %v671, %v667
    %v708 = vpack.c.b16 %v676, %v672
    %v709 = vpack.c.b16 %v677, %v673
    %v710 = vpack.c.b16 %v678, %v674
    %v711 = vpack.c.b16 %v679, %v675
    %744 = vmatpush.bf16.msra.mxu0 %v708
    %745 = vmatpush.bf16.msra.mxu0 %v704
    %746 = vmatpush.bf16.msra.mxu0 %v700
    %747 = vmatpush.bf16.msra.mxu0 %v696
    %748 = vmatpush.bf16.msra.mxu0 %v692
    %749 = vmatpush.bf16.msra.mxu0 %v688
    %750 = vmatpush.bf16.msra.mxu0 %v684
    %751 = vmatpush.bf16.msra.mxu0 %v680
    %752 = vmatmul.bf16.gmra.mxu0 0
    %v753 = vpop.f32.mrf.mxu0
    %v754 = vadd.f32 0.0, %v753
    %v755 = vpop.f32.mrf.mxu0
    %v756 = vadd.f32 0.0, %v755
    %757 = vdwg.mxu0
    %758 = vmatpush.bf16.msra.mxu0 %v709
    %759 = vmatpush.bf16.msra.mxu0 %v705
    %760 = vmatpush.bf16.msra.mxu0 %v701
    %761 = vmatpush.bf16.msra.mxu0 %v697
    %762 = vmatpush.bf16.msra.mxu0 %v693
    %763 = vmatpush.bf16.msra.mxu0 %v689
    %764 = vmatpush.bf16.msra.mxu0 %v685
    %765 = vmatpush.bf16.msra.mxu0 %v681
    %766 = vmatmul.bf16.gmra.mxu0 0
    %v767 = vpop.f32.mrf.mxu0
    %v768 = vadd.f32 0.0, %v767
    %v769 = vpop.f32.mrf.mxu0
    %v770 = vadd.f32 0.0, %v769
    %771 = vdwg.mxu0
    %772 = vmatpush.bf16.msra.mxu0 %v710
    %773 = vmatpush.bf16.msra.mxu0 %v706
    %774 = vmatpush.bf16.msra.mxu0 %v702
    %775 = vmatpush.bf16.msra.mxu0 %v698
    %776 = vmatpush.bf16.msra.mxu0 %v694
    %777 = vmatpush.bf16.msra.mxu0 %v690
    %778 = vmatpush.bf16.msra.mxu0 %v686
    %779 = vmatpush.bf16.msra.mxu0 %v682
    %780 = vmatmul.bf16.gmra.mxu0 0
    %v781 = vpop.f32.mrf.mxu0
    %v782 = vadd.f32 0.0, %v781
    %v783 = vpop.f32.mrf.mxu0
    %v784 = vadd.f32 0.0, %v783
    %785 = vdwg.mxu0
    %786 = vmatpush.bf16.msra.mxu0 %v711
    %787 = vmatpush.bf16.msra.mxu0 %v707
    %788 = vmatpush.bf16.msra.mxu0 %v703
    %789 = vmatpush.bf16.msra.mxu0 %v699
    %790 = vmatpush.bf16.msra.mxu0 %v695
    %791 = vmatpush.bf16.msra.mxu0 %v691
    %792 = vmatpush.bf16.msra.mxu0 %v687
    %793 = vmatpush.bf16.msra.mxu0 %v683
    %794 = vmatmul.bf16.gmra.mxu0 0
    %v795 = vpop.f32.mrf.mxu0
    %v796 = vadd.f32 0.0, %v795
    %v797 = vpop.f32.mrf.mxu0
    %v798 = vadd.f32 0.0, %v797
    %799 = vdwg.mxu0
    %v800 = vunpack.c.l.bf16 %v548
    %v801 = vunpack.c.h.bf16 %v548
    %v802 = vunpack.c.l.bf16 %v549
    %v803 = vunpack.c.h.bf16 %v549
    %v804 = vunpack.c.l.bf16 %v550
    %v805 = vunpack.c.h.bf16 %v550
    %v806 = vunpack.c.l.bf16 %v551
    %v807 = vunpack.c.h.bf16 %v551
    %v808 = vadd.f32 %v800, %v754
    %v809 = vadd.f32 %v801, %v768
    %v810 = vadd.f32 %v802, %v782
    %v811 = vadd.f32 %v803, %v796
    %v812 = vadd.f32 %v804, %v756
    %v813 = vadd.f32 %v805, %v770
    %v814 = vadd.f32 %v806, %v784
    %v815 = vadd.f32 %v807, %v798
    %v816 = vmul.f32 %v808, 0.5
    %v817 = vmul.f32 %v809, 0.5
    %v818 = vmul.f32 %v810, 0.5
    %v819 = vmul.f32 %v812, 0.5
    %v820 = vmul.f32 %v813, 0.5
    %v821 = vmul.f32 %v814, 0.5
    %v822 = vtanh.pop %v816
    %v823 = vtanh.pop %v817
    %v824 = vtanh.pop %v818
    %v825 = vtanh.pop %v819
    %v826 = vtanh.pop %v820
    %v827 = vtanh.pop %v821
    %v828 = vmul.f32 %v822, 0.5
    %v829 = vmul.f32 %v823, 0.5
    %v830 = vmul.f32 %v824, 0.5
    %v831 = vmul.f32 %v825, 0.5
    %v832 = vmul.f32 %v826, 0.5
    %v833 = vmul.f32 %v827, 0.5
    %v834 = vadd.f32 %v828, 0.5
    %v835 = vadd.f32 %v829, 0.5
    %v836 = vadd.f32 %v830, 0.5
    %v837 = vadd.f32 %v831, 0.5
    %v838 = vadd.f32 %v832, 0.5
    %v839 = vadd.f32 %v833, 0.5
    %v840 = vtanh.pop %v811
    %v841 = vtanh.pop %v815
    %v842 = vmul.f32 %v835, 0.0
    %v843 = vmul.f32 %v838, 0.0
    %v844 = vmul.f32 %v834, %v840
    %v845 = vmul.f32 %v837, %v841
    %v846 = vadd.f32 %v842, %v844
    %v847 = vadd.f32 %v843, %v845
    %v848 = vtanh.pop %v846
    %v849 = vtanh.pop %v847
    %v850 = vmul.f32 %v836, %v848
    %v851 = vmul.f32 %v839, %v849
    %v852 = vpack.c.bf16 %v851, %v850
    %v853 = vld [vmem:[#allocation2 + $0x20] sm:$0xff]
    %v854 = vld [vmem:[#allocation2 + $0x28] sm:$0xff]
    %v855 = vld [vmem:[#allocation2 + $0x30] sm:$0xff]
    %v856 = vld [vmem:[#allocation2 + $0x38] sm:$0xff]
    %857 = vmatpush.bf16.msra.mxu0 %v708
    %858 = vmatpush.bf16.msra.mxu0 %v704
    %859 = vmatpush.bf16.msra.mxu0 %v700
    %860 = vmatpush.bf16.msra.mxu0 %v696
    %861 = vmatpush.bf16.msra.mxu0 %v692
    %862 = vmatpush.bf16.msra.mxu0 %v688
    %863 = vmatpush.bf16.msra.mxu0 %v684
    %864 = vmatpush.bf16.msra.mxu0 %v680
    %865 = vmatmul.bf16.gmra.mxu0 %v852
    %v866 = vpop.f32.mrf.mxu0
    %v867 = vadd.f32 0.0, %v866
    %v868 = vpop.f32.mrf.mxu0
    %v869 = vadd.f32 0.0, %v868
    %870 = vdwg.mxu0
    %871 = vmatpush.bf16.msra.mxu0 %v709
    %872 = vmatpush.bf16.msra.mxu0 %v705
    %873 = vmatpush.bf16.msra.mxu0 %v701
    %874 = vmatpush.bf16.msra.mxu0 %v697
    %875 = vmatpush.bf16.msra.mxu0 %v693
    %876 = vmatpush.bf16.msra.mxu0 %v689
    %877 = vmatpush.bf16.msra.mxu0 %v685
    %878 = vmatpush.bf16.msra.mxu0 %v681
    %879 = vmatmul.bf16.gmra.mxu0 %v852
    %v880 = vpop.f32.mrf.mxu0
    %v881 = vadd.f32 0.0, %v880
    %v882 = vpop.f32.mrf.mxu0
    %v883 = vadd.f32 0.0, %v882
    %884 = vdwg.mxu0
    %885 = vmatpush.bf16.msra.mxu0 %v710
    %886 = vmatpush.bf16.msra.mxu0 %v706
    %887 = vmatpush.bf16.msra.mxu0 %v702
    %888 = vmatpush.bf16.msra.mxu0 %v698
    %889 = vmatpush.bf16.msra.mxu0 %v694
    %890 = vmatpush.bf16.msra.mxu0 %v690
    %891 = vmatpush.bf16.msra.mxu0 %v686
    %892 = vmatpush.bf16.msra.mxu0 %v682
    %893 = vmatmul.bf16.gmra.mxu0 %v852
    %v894 = vpop.f32.mrf.mxu0
    %v895 = vadd.f32 0.0, %v894
    %v896 = vpop.f32.mrf.mxu0
    %v897 = vadd.f32 0.0, %v896
    %898 = vdwg.mxu0
    %899 = vmatpush.bf16.msra.mxu0 %v711
    %900 = vmatpush.bf16.msra.mxu0 %v707
    %901 = vmatpush.bf16.msra.mxu0 %v703
    %902 = vmatpush.bf16.msra.mxu0 %v699
    %903 = vmatpush.bf16.msra.mxu0 %v695
    %904 = vmatpush.bf16.msra.mxu0 %v691
    %905 = vmatpush.bf16.msra.mxu0 %v687
    %906 = vmatpush.bf16.msra.mxu0 %v683
    %907 = vmatmul.bf16.gmra.mxu0 %v852
    %v908 = vpop.f32.mrf.mxu0
    %v909 = vadd.f32 0.0, %v908
    %v910 = vpop.f32.mrf.mxu0
    %v911 = vadd.f32 0.0, %v910
    %912 = vdwg.mxu0
    %v913 = vunpack.c.l.bf16 %v853
    %v914 = vunpack.c.h.bf16 %v853
    %v915 = vunpack.c.l.bf16 %v854
    %v916 = vunpack.c.h.bf16 %v854
    %v917 = vunpack.c.l.bf16 %v855
    %v918 = vunpack.c.h.bf16 %v855
    %v919 = vunpack.c.l.bf16 %v856
    %v920 = vunpack.c.h.bf16 %v856
    %v921 = vadd.f32 %v913, %v867
    %v922 = vadd.f32 %v914, %v881
    %v923 = vadd.f32 %v915, %v895
    %v924 = vadd.f32 %v916, %v909
    %v925 = vadd.f32 %v917, %v869
    %v926 = vadd.f32 %v918, %v883
    %v927 = vadd.f32 %v919, %v897
    %v928 = vadd.f32 %v920, %v911
    %v929 = vmul.f32 %v921, 0.5
    %v930 = vmul.f32 %v922, 0.5
    %v931 = vmul.f32 %v923, 0.5
    %v932 = vmul.f32 %v925, 0.5
    %v933 = vmul.f32 %v926, 0.5
    %v934 = vmul.f32 %v927, 0.5
    %v935 = vtanh.pop %v929
    %v936 = vtanh.pop %v930
    %v937 = vtanh.pop %v931
    %v938 = vtanh.pop %v932
    %v939 = vtanh.pop %v933
    %v940 = vtanh.pop %v934
    %v941 = vmul.f32 %v935, 0.5
    %v942 = vmul.f32 %v936, 0.5
    %v943 = vmul.f32 %v937, 0.5
    %v944 = vmul.f32 %v938, 0.5
    %v945 = vmul.f32 %v939, 0.5
    %v946 = vmul.f32 %v940, 0.5
    %v947 = vadd.f32 %v941, 0.5
    %v948 = vadd.f32 %v942, 0.5
    %v949 = vadd.f32 %v943, 0.5
    %v950 = vadd.f32 %v944, 0.5
    %v951 = vadd.f32 %v945, 0.5
    %v952 = vadd.f32 %v946, 0.5
    %v953 = vtanh.pop %v924
    %v954 = vtanh.pop %v928
    %v955 = vmul.f32 %v948, %v846
    %v956 = vmul.f32 %v951, %v847
    %v957 = vmul.f32 %v947, %v953
    %v958 = vmul.f32 %v950, %v954
    %v959 = vadd.f32 %v955, %v957
    %v960 = vadd.f32 %v956, %v958
    %v961 = vtanh.pop %v959
    %v962 = vtanh.pop %v960
    %v963 = vmul.f32 %v949, %v961
    %v964 = vmul.f32 %v952, %v962
    %v965 = vpack.c.bf16 %v964, %v963
    %v966 = vld [vmem:[#allocation2 + $0x40] sm:$0xff]
    %v967 = vld [vmem:[#allocation2 + $0x48] sm:$0xff]
    %v968 = vld [vmem:[#allocation2 + $0x50] sm:$0xff]
    %v969 = vld [vmem:[#allocation2 + $0x58] sm:$0xff]
    %970 = vmatpush.bf16.msra.mxu0 %v708
    %971 = vmatpush.bf16.msra.mxu0 %v704
    %972 = vmatpush.bf16.msra.mxu0 %v700
    %973 = vmatpush.bf16.msra.mxu0 %v696
    %974 = vmatpush.bf16.msra.mxu0 %v692
    %975 = vmatpush.bf16.msra.mxu0 %v688
    %976 = vmatpush.bf16.msra.mxu0 %v684
    %977 = vmatpush.bf16.msra.mxu0 %v680
    %978 = vmatmul.bf16.gmra.mxu0 %v965
    %v979 = vpop.f32.mrf.mxu0
    %v980 = vadd.f32 0.0, %v979
    %v981 = vpop.f32.mrf.mxu0
    %v982 = vadd.f32 0.0, %v981
    %983 = vdwg.mxu0
    %984 = vmatpush.bf16.msra.mxu0 %v709
    %985 = vmatpush.bf16.msra.mxu0 %v705
    %986 = vmatpush.bf16.msra.mxu0 %v701
    %987 = vmatpush.bf16.msra.mxu0 %v697
    %988 = vmatpush.bf16.msra.mxu0 %v693
    %989 = vmatpush.bf16.msra.mxu0 %v689
    %990 = vmatpush.bf16.msra.mxu0 %v685
    %991 = vmatpush.bf16.msra.mxu0 %v681
    %992 = vmatmul.bf16.gmra.mxu0 %v965
    %v993 = vpop.f32.mrf.mxu0
    %v994 = vadd.f32 0.0, %v993
    %v995 = vpop.f32.mrf.mxu0
    %v996 = vadd.f32 0.0, %v995
    %997 = vdwg.mxu0
    %998 = vmatpush.bf16.msra.mxu0 %v710
    %999 = vmatpush.bf16.msra.mxu0 %v706
    %1000 = vmatpush.bf16.msra.mxu0 %v702
    %1001 = vmatpush.bf16.msra.mxu0 %v698
    %1002 = vmatpush.bf16.msra.mxu0 %v694
    %1003 = vmatpush.bf16.msra.mxu0 %v690
    %1004 = vmatpush.bf16.msra.mxu0 %v686
    %1005 = vmatpush.bf16.msra.mxu0 %v682
    %1006 = vmatmul.bf16.gmra.mxu0 %v965
    %v1007 = vpop.f32.mrf.mxu0
    %v1008 = vadd.f32 0.0, %v1007
    %v1009 = vpop.f32.mrf.mxu0
    %v1010 = vadd.f32 0.0, %v1009
    %1011 = vdwg.mxu0
    %1012 = vmatpush.bf16.msra.mxu0 %v711
    %1013 = vmatpush.bf16.msra.mxu0 %v707
    %1014 = vmatpush.bf16.msra.mxu0 %v703
    %1015 = vmatpush.bf16.msra.mxu0 %v699
    %1016 = vmatpush.bf16.msra.mxu0 %v695
    %1017 = vmatpush.bf16.msra.mxu0 %v691
    %1018 = vmatpush.bf16.msra.mxu0 %v687
    %1019 = vmatpush.bf16.msra.mxu0 %v683
    %1020 = vmatmul.bf16.gmra.mxu0 %v965
    %v1021 = vpop.f32.mrf.mxu0
    %v1022 = vadd.f32 0.0, %v1021
    %v1023 = vpop.f32.mrf.mxu0
    %v1024 = vadd.f32 0.0, %v1023
    %1025 = vdwg.mxu0
    %v1026 = vunpack.c.l.bf16 %v966
    %v1027 = vunpack.c.h.bf16 %v966
    %v1028 = vunpack.c.l.bf16 %v967
    %v1029 = vunpack.c.h.bf16 %v967
    %v1030 = vunpack.c.l.bf16 %v968
    %v1031 = vunpack.c.h.bf16 %v968
    %v1032 = vunpack.c.l.bf16 %v969
    %v1033 = vunpack.c.h.bf16 %v969
    %v1034 = vadd.f32 %v1026, %v980
    %v1035 = vadd.f32 %v1027, %v994
    %v1036 = vadd.f32 %v1028, %v1008
    %v1037 = vadd.f32 %v1029, %v1022
    %v1038 = vadd.f32 %v1030, %v982
    %v1039 = vadd.f32 %v1031, %v996
    %v1040 = vadd.f32 %v1032, %v1010
    %v1041 = vadd.f32 %v1033, %v1024
    %v1042 = vmul.f32 %v1034, 0.5
    %v1043 = vmul.f32 %v1035, 0.5
    %v1044 = vmul.f32 %v1036, 0.5
    %v1045 = vmul.f32 %v1038, 0.5
    %v1046 = vmul.f32 %v1039, 0.5
    %v1047 = vmul.f32 %v1040, 0.5
    %v1048 = vtanh.pop %v1042
    %v1049 = vtanh.pop %v1043
    %v1050 = vtanh.pop %v1044
    %v1051 = vtanh.pop %v1045
    %v1052 = vtanh.pop %v1046
    %v1053 = vtanh.pop %v1047
    %v1054 = vmul.f32 %v1048, 0.5
    %v1055 = vmul.f32 %v1049, 0.5
    %v1056 = vmul.f32 %v1050, 0.5
    %v1057 = vmul.f32 %v1051, 0.5
    %v1058 = vmul.f32 %v1052, 0.5
    %v1059 = vmul.f32 %v1053, 0.5
    %v1060 = vadd.f32 %v1054, 0.5
    %v1061 = vadd.f32 %v1055, 0.5
    %v1062 = vadd.f32 %v1056, 0.5
    %v1063 = vadd.f32 %v1057, 0.5
    %v1064 = vadd.f32 %v1058, 0.5
    %v1065 = vadd.f32 %v1059, 0.5
    %v1066 = vtanh.pop %v1037
    %v1067 = vtanh.pop %v1041
    %v1068 = vmul.f32 %v1061, %v959
    %v1069 = vmul.f32 %v1064, %v960
    %v1070 = vmul.f32 %v1060, %v1066
    %v1071 = vmul.f32 %v1063, %v1067
    %v1072 = vadd.f32 %v1068, %v1070
    %v1073 = vadd.f32 %v1069, %v1071
    %v1074 = vtanh.pop %v1072
    %v1075 = vtanh.pop %v1073
    %v1076 = vmul.f32 %v1062, %v1074
    %v1077 = vmul.f32 %v1065, %v1075
    %v1078 = vpack.c.bf16 %v1077, %v1076
    %v1079 = vld [vmem:[#allocation2 + $0x60] sm:$0xff]
    %v1080 = vld [vmem:[#allocation2 + $0x68] sm:$0xff]
    %v1081 = vld [vmem:[#allocation2 + $0x70] sm:$0xff]
    %v1082 = vld [vmem:[#allocation2 + $0x78] sm:$0xff]
    %1083 = vmatpush.bf16.msra.mxu0 %v708
    %1084 = vmatpush.bf16.msra.mxu0 %v704
    %1085 = vmatpush.bf16.msra.mxu0 %v700
    %1086 = vmatpush.bf16.msra.mxu0 %v696
    %1087 = vmatpush.bf16.msra.mxu0 %v692
    %1088 = vmatpush.bf16.msra.mxu0 %v688
    %1089 = vmatpush.bf16.msra.mxu0 %v684
    %1090 = vmatpush.bf16.msra.mxu0 %v680
    %1091 = vmatmul.bf16.gmra.mxu0 %v1078
    %v1092 = vpop.f32.mrf.mxu0
    %v1093 = vadd.f32 0.0, %v1092
    %v1094 = vpop.f32.mrf.mxu0
    %v1095 = vadd.f32 0.0, %v1094
    %1096 = vdwg.mxu0
    %1097 = vmatpush.bf16.msra.mxu0 %v709
    %1098 = vmatpush.bf16.msra.mxu0 %v705
    %1099 = vmatpush.bf16.msra.mxu0 %v701
    %1100 = vmatpush.bf16.msra.mxu0 %v697
    %1101 = vmatpush.bf16.msra.mxu0 %v693
    %1102 = vmatpush.bf16.msra.mxu0 %v689
    %1103 = vmatpush.bf16.msra.mxu0 %v685
    %1104 = vmatpush.bf16.msra.mxu0 %v681
    %1105 = vmatmul.bf16.gmra.mxu0 %v1078
    %v1106 = vpop.f32.mrf.mxu0
    %v1107 = vadd.f32 0.0, %v1106
    %v1108 = vpop.f32.mrf.mxu0
    %v1109 = vadd.f32 0.0, %v1108
    %1110 = vdwg.mxu0
    %1111 = vmatpush.bf16.msra.mxu0 %v710
    %1112 = vmatpush.bf16.msra.mxu0 %v706
    %1113 = vmatpush.bf16.msra.mxu0 %v702
    %1114 = vmatpush.bf16.msra.mxu0 %v698
    %1115 = vmatpush.bf16.msra.mxu0 %v694
    %1116 = vmatpush.bf16.msra.mxu0 %v690
    %1117 = vmatpush.bf16.msra.mxu0 %v686
    %1118 = vmatpush.bf16.msra.mxu0 %v682
    %1119 = vmatmul.bf16.gmra.mxu0 %v1078
    %v1120 = vpop.f32.mrf.mxu0
    %v1121 = vadd.f32 0.0, %v1120
    %v1122 = vpop.f32.mrf.mxu0
    %v1123 = vadd.f32 0.0, %v1122
    %1124 = vdwg.mxu0
    %1125 = vmatpush.bf16.msra.mxu0 %v711
    %1126 = vmatpush.bf16.msra.mxu0 %v707
    %1127 = vmatpush.bf16.msra.mxu0 %v703
    %1128 = vmatpush.bf16.msra.mxu0 %v699
    %1129 = vmatpush.bf16.msra.mxu0 %v695
    %1130 = vmatpush.bf16.msra.mxu0 %v691
    %1131 = vmatpush.bf16.msra.mxu0 %v687
    %1132 = vmatpush.bf16.msra.mxu0 %v683
    %1133 = vmatmul.bf16.gmra.mxu0 %v1078
    %v1134 = vpop.f32.mrf.mxu0
    %v1135 = vadd.f32 0.0, %v1134
    %v1136 = vpop.f32.mrf.mxu0
    %v1137 = vadd.f32 0.0, %v1136
    %1138 = vdwg.mxu0
    %v1139 = vunpack.c.l.bf16 %v1079
    %v1140 = vunpack.c.h.bf16 %v1079
    %v1141 = vunpack.c.l.bf16 %v1080
    %v1142 = vunpack.c.h.bf16 %v1080
    %v1143 = vunpack.c.l.bf16 %v1081
    %v1144 = vunpack.c.h.bf16 %v1081
    %v1145 = vunpack.c.l.bf16 %v1082
    %v1146 = vunpack.c.h.bf16 %v1082
    %v1147 = vadd.f32 %v1139, %v1093
    %v1148 = vadd.f32 %v1140, %v1107
    %v1149 = vadd.f32 %v1141, %v1121
    %v1150 = vadd.f32 %v1142, %v1135
    %v1151 = vadd.f32 %v1143, %v1095
    %v1152 = vadd.f32 %v1144, %v1109
    %v1153 = vadd.f32 %v1145, %v1123
    %v1154 = vadd.f32 %v1146, %v1137
    %v1155 = vmul.f32 %v1147, 0.5
    %v1156 = vmul.f32 %v1148, 0.5
    %v1157 = vmul.f32 %v1149, 0.5
    %v1158 = vmul.f32 %v1151, 0.5
    %v1159 = vmul.f32 %v1152, 0.5
    %v1160 = vmul.f32 %v1153, 0.5
    %v1161 = vtanh.pop %v1155
    %v1162 = vtanh.pop %v1156
    %v1163 = vtanh.pop %v1157
    %v1164 = vtanh.pop %v1158
    %v1165 = vtanh.pop %v1159
    %v1166 = vtanh.pop %v1160
    %v1167 = vmul.f32 %v1161, 0.5
    %v1168 = vmul.f32 %v1162, 0.5
    %v1169 = vmul.f32 %v1163, 0.5
    %v1170 = vmul.f32 %v1164, 0.5
    %v1171 = vmul.f32 %v1165, 0.5
    %v1172 = vmul.f32 %v1166, 0.5
    %v1173 = vadd.f32 %v1167, 0.5
    %v1174 = vadd.f32 %v1168, 0.5
    %v1175 = vadd.f32 %v1169, 0.5
    %v1176 = vadd.f32 %v1170, 0.5
    %v1177 = vadd.f32 %v1171, 0.5
    %v1178 = vadd.f32 %v1172, 0.5
    %v1179 = vtanh.pop %v1150
    %v1180 = vtanh.pop %v1154
    %v1181 = vmul.f32 %v1174, %v1072
    %v1182 = vmul.f32 %v1177, %v1073
    %v1183 = vmul.f32 %v1173, %v1179
    %v1184 = vmul.f32 %v1176, %v1180
    %v1185 = vadd.f32 %v1181, %v1183
    %v1186 = vadd.f32 %v1182, %v1184
    %v1187 = vtanh.pop %v1185
    %v1188 = vtanh.pop %v1186
    %v1189 = vmul.f32 %v1175, %v1187
    %v1190 = vmul.f32 %v1178, %v1188
    %v1191 = vpack.c.bf16 %v1190, %v1189
    %v1192 = vld [vmem:[#allocation2 + $0x80] sm:$0xff]
    %v1193 = vld [vmem:[#allocation2 + $0x88] sm:$0xff]
    %v1194 = vld [vmem:[#allocation2 + $0x90] sm:$0xff]
    %v1195 = vld [vmem:[#allocation2 + $0x98] sm:$0xff]
    %1196 = vmatpush.bf16.msra.mxu0 %v708
    %1197 = vmatpush.bf16.msra.mxu0 %v704
    %1198 = vmatpush.bf16.msra.mxu0 %v700
    %1199 = vmatpush.bf16.msra.mxu0 %v696
    %1200 = vmatpush.bf16.msra.mxu0 %v692
    %1201 = vmatpush.bf16.msra.mxu0 %v688
    %1202 = vmatpush.bf16.msra.mxu0 %v684
    %1203 = vmatpush.bf16.msra.mxu0 %v680
    %1204 = vmatmul.bf16.gmra.mxu0 %v1191
    %v1205 = vpop.f32.mrf.mxu0
    %v1206 = vadd.f32 0.0, %v1205
    %v1207 = vpop.f32.mrf.mxu0
    %v1208 = vadd.f32 0.0, %v1207
    %1209 = vdwg.mxu0
    %1210 = vmatpush.bf16.msra.mxu0 %v709
    %1211 = vmatpush.bf16.msra.mxu0 %v705
    %1212 = vmatpush.bf16.msra.mxu0 %v701
    %1213 = vmatpush.bf16.msra.mxu0 %v697
    %1214 = vmatpush.bf16.msra.mxu0 %v693
    %1215 = vmatpush.bf16.msra.mxu0 %v689
    %1216 = vmatpush.bf16.msra.mxu0 %v685
    %1217 = vmatpush.bf16.msra.mxu0 %v681
    %1218 = vmatmul.bf16.gmra.mxu0 %v1191
    %v1219 = vpop.f32.mrf.mxu0
    %v1220 = vadd.f32 0.0, %v1219
    %v1221 = vpop.f32.mrf.mxu0
    %v1222 = vadd.f32 0.0, %v1221
    %1223 = vdwg.mxu0
    %1224 = vmatpush.bf16.msra.mxu0 %v710
    %1225 = vmatpush.bf16.msra.mxu0 %v706
    %1226 = vmatpush.bf16.msra.mxu0 %v702
    %1227 = vmatpush.bf16.msra.mxu0 %v698
    %1228 = vmatpush.bf16.msra.mxu0 %v694
    %1229 = vmatpush.bf16.msra.mxu0 %v690
    %1230 = vmatpush.bf16.msra.mxu0 %v686
    %1231 = vmatpush.bf16.msra.mxu0 %v682
    %1232 = vmatmul.bf16.gmra.mxu0 %v1191
    %v1233 = vpop.f32.mrf.mxu0
    %v1234 = vadd.f32 0.0, %v1233
    %v1235 = vpop.f32.mrf.mxu0
    %v1236 = vadd.f32 0.0, %v1235
    %1237 = vdwg.mxu0
    %1238 = vmatpush.bf16.msra.mxu0 %v711
    %1239 = vmatpush.bf16.msra.mxu0 %v707
    %1240 = vmatpush.bf16.msra.mxu0 %v703
    %1241 = vmatpush.bf16.msra.mxu0 %v699
    %1242 = vmatpush.bf16.msra.mxu0 %v695
    %1243 = vmatpush.bf16.msra.mxu0 %v691
    %1244 = vmatpush.bf16.msra.mxu0 %v687
    %1245 = vmatpush.bf16.msra.mxu0 %v683
    %1246 = vmatmul.bf16.gmra.mxu0 %v1191
    %v1247 = vpop.f32.mrf.mxu0
    %v1248 = vadd.f32 0.0, %v1247
    %v1249 = vpop.f32.mrf.mxu0
    %v1250 = vadd.f32 0.0, %v1249
    %1251 = vdwg.mxu0
    %v1252 = vunpack.c.l.bf16 %v1192
    %v1253 = vunpack.c.h.bf16 %v1192
    %v1254 = vunpack.c.l.bf16 %v1193
    %v1255 = vunpack.c.h.bf16 %v1193
    %v1256 = vunpack.c.l.bf16 %v1194
    %v1257 = vunpack.c.h.bf16 %v1194
    %v1258 = vunpack.c.l.bf16 %v1195
    %v1259 = vunpack.c.h.bf16 %v1195
    %v1260 = vadd.f32 %v1252, %v1206
    %v1261 = vadd.f32 %v1253, %v1220
    %v1262 = vadd.f32 %v1254, %v1234
    %v1263 = vadd.f32 %v1255, %v1248
    %v1264 = vadd.f32 %v1256, %v1208
    %v1265 = vadd.f32 %v1257, %v1222
    %v1266 = vadd.f32 %v1258, %v1236
    %v1267 = vadd.f32 %v1259, %v1250
    %v1268 = vmul.f32 %v1260, 0.5
    %v1269 = vmul.f32 %v1261, 0.5
    %v1270 = vmul.f32 %v1262, 0.5
    %v1271 = vmul.f32 %v1264, 0.5
    %v1272 = vmul.f32 %v1265, 0.5
    %v1273 = vmul.f32 %v1266, 0.5
    %v1274 = vtanh.pop %v1268
    %v1275 = vtanh.pop %v1269
    %v1276 = vtanh.pop %v1270
    %v1277 = vtanh.pop %v1271
    %v1278 = vtanh.pop %v1272
    %v1279 = vtanh.pop %v1273
    %v1280 = vmul.f32 %v1274, 0.5
    %v1281 = vmul.f32 %v1275, 0.5
    %v1282 = vmul.f32 %v1276, 0.5
    %v1283 = vmul.f32 %v1277, 0.5
    %v1284 = vmul.f32 %v1278, 0.5
    %v1285 = vmul.f32 %v1279, 0.5
    %v1286 = vadd.f32 %v1280, 0.5
    %v1287 = vadd.f32 %v1281, 0.5
    %v1288 = vadd.f32 %v1282, 0.5
    %v1289 = vadd.f32 %v1283, 0.5
    %v1290 = vadd.f32 %v1284, 0.5
    %v1291 = vadd.f32 %v1285, 0.5
    %v1292 = vtanh.pop %v1263
    %v1293 = vtanh.pop %v1267
    %v1294 = vmul.f32 %v1287, %v1185
    %v1295 = vmul.f32 %v1290, %v1186
    %v1296 = vmul.f32 %v1286, %v1292
    %v1297 = vmul.f32 %v1289, %v1293
    %v1298 = vadd.f32 %v1294, %v1296
    %v1299 = vadd.f32 %v1295, %v1297
    %v1300 = vtanh.pop %v1298
    %v1301 = vtanh.pop %v1299
    %v1302 = vmul.f32 %v1288, %v1300
    %v1303 = vmul.f32 %v1291, %v1301
    %v1304 = vpack.c.bf16 %v1303, %v1302
    %v1305 = vld [vmem:[#allocation2 + $0xa0] sm:$0xff]
    %v1306 = vld [vmem:[#allocation2 + $0xa8] sm:$0xff]
    %v1307 = vld [vmem:[#allocation2 + $0xb0] sm:$0xff]
    %v1308 = vld [vmem:[#allocation2 + $0xb8] sm:$0xff]
    %1309 = vmatpush.bf16.msra.mxu0 %v708
    %1310 = vmatpush.bf16.msra.mxu0 %v704
    %1311 = vmatpush.bf16.msra.mxu0 %v700
    %1312 = vmatpush.bf16.msra.mxu0 %v696
    %1313 = vmatpush.bf16.msra.mxu0 %v692
    %1314 = vmatpush.bf16.msra.mxu0 %v688
    %1315 = vmatpush.bf16.msra.mxu0 %v684
    %1316 = vmatpush.bf16.msra.mxu0 %v680
    %1317 = vmatmul.bf16.gmra.mxu0 %v1304
    %v1318 = vpop.f32.mrf.mxu0
    %v1319 = vadd.f32 0.0, %v1318
    %v1320 = vpop.f32.mrf.mxu0
    %v1321 = vadd.f32 0.0, %v1320
    %1322 = vdwg.mxu0
    %1323 = vmatpush.bf16.msra.mxu0 %v709
    %1324 = vmatpush.bf16.msra.mxu0 %v705
    %1325 = vmatpush.bf16.msra.mxu0 %v701
    %1326 = vmatpush.bf16.msra.mxu0 %v697
    %1327 = vmatpush.bf16.msra.mxu0 %v693
    %1328 = vmatpush.bf16.msra.mxu0 %v689
    %1329 = vmatpush.bf16.msra.mxu0 %v685
    %1330 = vmatpush.bf16.msra.mxu0 %v681
    %1331 = vmatmul.bf16.gmra.mxu0 %v1304
    %v1332 = vpop.f32.mrf.mxu0
    %v1333 = vadd.f32 0.0, %v1332
    %v1334 = vpop.f32.mrf.mxu0
    %v1335 = vadd.f32 0.0, %v1334
    %1336 = vdwg.mxu0
    %1337 = vmatpush.bf16.msra.mxu0 %v710
    %1338 = vmatpush.bf16.msra.mxu0 %v706
    %1339 = vmatpush.bf16.msra.mxu0 %v702
    %1340 = vmatpush.bf16.msra.mxu0 %v698
    %1341 = vmatpush.bf16.msra.mxu0 %v694
    %1342 = vmatpush.bf16.msra.mxu0 %v690
    %1343 = vmatpush.bf16.msra.mxu0 %v686
    %1344 = vmatpush.bf16.msra.mxu0 %v682
    %1345 = vmatmul.bf16.gmra.mxu0 %v1304
    %v1346 = vpop.f32.mrf.mxu0
    %v1347 = vadd.f32 0.0, %v1346
    %v1348 = vpop.f32.mrf.mxu0
    %v1349 = vadd.f32 0.0, %v1348
    %1350 = vdwg.mxu0
    %1351 = vmatpush.bf16.msra.mxu0 %v711
    %1352 = vmatpush.bf16.msra.mxu0 %v707
    %1353 = vmatpush.bf16.msra.mxu0 %v703
    %1354 = vmatpush.bf16.msra.mxu0 %v699
    %1355 = vmatpush.bf16.msra.mxu0 %v695
    %1356 = vmatpush.bf16.msra.mxu0 %v691
    %1357 = vmatpush.bf16.msra.mxu0 %v687
    %1358 = vmatpush.bf16.msra.mxu0 %v683
    %1359 = vmatmul.bf16.gmra.mxu0 %v1304
    %v1360 = vpop.f32.mrf.mxu0
    %v1361 = vadd.f32 0.0, %v1360
    %v1362 = vpop.f32.mrf.mxu0
    %v1363 = vadd.f32 0.0, %v1362
    %1364 = vdwg.mxu0
    %v1365 = vunpack.c.l.bf16 %v1305
    %v1366 = vunpack.c.h.bf16 %v1305
    %v1367 = vunpack.c.l.bf16 %v1306
    %v1368 = vunpack.c.h.bf16 %v1306
    %v1369 = vunpack.c.l.bf16 %v1307
    %v1370 = vunpack.c.h.bf16 %v1307
    %v1371 = vunpack.c.l.bf16 %v1308
    %v1372 = vunpack.c.h.bf16 %v1308
    %v1373 = vadd.f32 %v1365, %v1319
    %v1374 = vadd.f32 %v1366, %v1333
    %v1375 = vadd.f32 %v1367, %v1347
    %v1376 = vadd.f32 %v1368, %v1361
    %v1377 = vadd.f32 %v1369, %v1321
    %v1378 = vadd.f32 %v1370, %v1335
    %v1379 = vadd.f32 %v1371, %v1349
    %v1380 = vadd.f32 %v1372, %v1363
    %v1381 = vmul.f32 %v1373, 0.5
    %v1382 = vmul.f32 %v1374, 0.5
    %v1383 = vmul.f32 %v1375, 0.5
    %v1384 = vmul.f32 %v1377, 0.5
    %v1385 = vmul.f32 %v1378, 0.5
    %v1386 = vmul.f32 %v1379, 0.5
    %v1387 = vtanh.pop %v1381
    %v1388 = vtanh.pop %v1382
    %v1389 = vtanh.pop %v1383
    %v1390 = vtanh.pop %v1384
    %v1391 = vtanh.pop %v1385
    %v1392 = vtanh.pop %v1386
    %v1393 = vmul.f32 %v1387, 0.5
    %v1394 = vmul.f32 %v1388, 0.5
    %v1395 = vmul.f32 %v1389, 0.5
    %v1396 = vmul.f32 %v1390, 0.5
    %v1397 = vmul.f32 %v1391, 0.5
    %v1398 = vmul.f32 %v1392, 0.5
    %v1399 = vadd.f32 %v1393, 0.5
    %v1400 = vadd.f32 %v1394, 0.5
    %v1401 = vadd.f32 %v1395, 0.5
    %v1402 = vadd.f32 %v1396, 0.5
    %v1403 = vadd.f32 %v1397, 0.5
    %v1404 = vadd.f32 %v1398, 0.5
    %v1405 = vtanh.pop %v1376
    %v1406 = vtanh.pop %v1380
    %v1407 = vmul.f32 %v1400, %v1298
    %v1408 = vmul.f32 %v1403, %v1299
    %v1409 = vmul.f32 %v1399, %v1405
    %v1410 = vmul.f32 %v1402, %v1406
    %v1411 = vadd.f32 %v1407, %v1409
    %v1412 = vadd.f32 %v1408, %v1410
    %v1413 = vtanh.pop %v1411
    %v1414 = vtanh.pop %v1412
    %v1415 = vmul.f32 %v1401, %v1413
    %v1416 = vmul.f32 %v1404, %v1414
    %v1417 = vpack.c.bf16 %v1416, %v1415
    %v1418 = vld [vmem:[#allocation2 + $0xc0] sm:$0xff]
    %v1419 = vld [vmem:[#allocation2 + $0xc8] sm:$0xff]
    %v1420 = vld [vmem:[#allocation2 + $0xd0] sm:$0xff]
    %v1421 = vld [vmem:[#allocation2 + $0xd8] sm:$0xff]
    %1422 = vmatpush.bf16.msra.mxu0 %v708
    %1423 = vmatpush.bf16.msra.mxu0 %v704
    %1424 = vmatpush.bf16.msra.mxu0 %v700
    %1425 = vmatpush.bf16.msra.mxu0 %v696
    %1426 = vmatpush.bf16.msra.mxu0 %v692
    %1427 = vmatpush.bf16.msra.mxu0 %v688
    %1428 = vmatpush.bf16.msra.mxu0 %v684
    %1429 = vmatpush.bf16.msra.mxu0 %v680
    %1430 = vmatmul.bf16.gmra.mxu0 %v1417
    %v1431 = vpop.f32.mrf.mxu0
    %v1432 = vadd.f32 0.0, %v1431
    %v1433 = vpop.f32.mrf.mxu0
    %v1434 = vadd.f32 0.0, %v1433
    %1435 = vdwg.mxu0
    %1436 = vmatpush.bf16.msra.mxu0 %v709
    %1437 = vmatpush.bf16.msra.mxu0 %v705
    %1438 = vmatpush.bf16.msra.mxu0 %v701
    %1439 = vmatpush.bf16.msra.mxu0 %v697
    %1440 = vmatpush.bf16.msra.mxu0 %v693
    %1441 = vmatpush.bf16.msra.mxu0 %v689
    %1442 = vmatpush.bf16.msra.mxu0 %v685
    %1443 = vmatpush.bf16.msra.mxu0 %v681
    %1444 = vmatmul.bf16.gmra.mxu0 %v1417
    %v1445 = vpop.f32.mrf.mxu0
    %v1446 = vadd.f32 0.0, %v1445
    %v1447 = vpop.f32.mrf.mxu0
    %v1448 = vadd.f32 0.0, %v1447
    %1449 = vdwg.mxu0
    %1450 = vmatpush.bf16.msra.mxu0 %v710
    %1451 = vmatpush.bf16.msra.mxu0 %v706
    %1452 = vmatpush.bf16.msra.mxu0 %v702
    %1453 = vmatpush.bf16.msra.mxu0 %v698
    %1454 = vmatpush.bf16.msra.mxu0 %v694
    %1455 = vmatpush.bf16.msra.mxu0 %v690
    %1456 = vmatpush.bf16.msra.mxu0 %v686
    %1457 = vmatpush.bf16.msra.mxu0 %v682
    %1458 = vmatmul.bf16.gmra.mxu0 %v1417
    %v1459 = vpop.f32.mrf.mxu0
    %v1460 = vadd.f32 0.0, %v1459
    %v1461 = vpop.f32.mrf.mxu0
    %v1462 = vadd.f32 0.0, %v1461
    %1463 = vdwg.mxu0
    %1464 = vmatpush.bf16.msra.mxu0 %v711
    %1465 = vmatpush.bf16.msra.mxu0 %v707
    %1466 = vmatpush.bf16.msra.mxu0 %v703
    %1467 = vmatpush.bf16.msra.mxu0 %v699
    %1468 = vmatpush.bf16.msra.mxu0 %v695
    %1469 = vmatpush.bf16.msra.mxu0 %v691
    %1470 = vmatpush.bf16.msra.mxu0 %v687
    %1471 = vmatpush.bf16.msra.mxu0 %v683
    %1472 = vmatmul.bf16.gmra.mxu0 %v1417
    %v1473 = vpop.f32.mrf.mxu0
    %v1474 = vadd.f32 0.0, %v1473
    %v1475 = vpop.f32.mrf.mxu0
    %v1476 = vadd.f32 0.0, %v1475
    %1477 = vdwg.mxu0
    %v1478 = vunpack.c.l.bf16 %v1418
    %v1479 = vunpack.c.h.bf16 %v1418
    %v1480 = vunpack.c.l.bf16 %v1419
    %v1481 = vunpack.c.h.bf16 %v1419
    %v1482 = vunpack.c.l.bf16 %v1420
    %v1483 = vunpack.c.h.bf16 %v1420
    %v1484 = vunpack.c.l.bf16 %v1421
    %v1485 = vunpack.c.h.bf16 %v1421
    %v1486 = vadd.f32 %v1478, %v1432
    %v1487 = vadd.f32 %v1479, %v1446
    %v1488 = vadd.f32 %v1480, %v1460
    %v1489 = vadd.f32 %v1481, %v1474
    %v1490 = vadd.f32 %v1482, %v1434
    %v1491 = vadd.f32 %v1483, %v1448
    %v1492 = vadd.f32 %v1484, %v1462
    %v1493 = vadd.f32 %v1485, %v1476
    %v1494 = vmul.f32 %v1486, 0.5
    %v1495 = vmul.f32 %v1487, 0.5
    %v1496 = vmul.f32 %v1488, 0.5
    %v1497 = vmul.f32 %v1490, 0.5
    %v1498 = vmul.f32 %v1491, 0.5
    %v1499 = vmul.f32 %v1492, 0.5
    %v1500 = vtanh.pop %v1494
    %v1501 = vtanh.pop %v1495
    %v1502 = vtanh.pop %v1496
    %v1503 = vtanh.pop %v1497
    %v1504 = vtanh.pop %v1498
    %v1505 = vtanh.pop %v1499
    %v1506 = vmul.f32 %v1500, 0.5
    %v1507 = vmul.f32 %v1501, 0.5
    %v1508 = vmul.f32 %v1502, 0.5
    %v1509 = vmul.f32 %v1503, 0.5
    %v1510 = vmul.f32 %v1504, 0.5
    %v1511 = vmul.f32 %v1505, 0.5
    %v1512 = vadd.f32 %v1506, 0.5
    %v1513 = vadd.f32 %v1507, 0.5
    %v1514 = vadd.f32 %v1508, 0.5
    %v1515 = vadd.f32 %v1509, 0.5
    %v1516 = vadd.f32 %v1510, 0.5
    %v1517 = vadd.f32 %v1511, 0.5
    %v1518 = vtanh.pop %v1489
    %v1519 = vtanh.pop %v1493
    %v1520 = vmul.f32 %v1513, %v1411
    %v1521 = vmul.f32 %v1516, %v1412
    %v1522 = vmul.f32 %v1512, %v1518
    %v1523 = vmul.f32 %v1515, %v1519
    %v1524 = vadd.f32 %v1520, %v1522
    %v1525 = vadd.f32 %v1521, %v1523
    %v1526 = vtanh.pop %v1524
    %v1527 = vtanh.pop %v1525
    %v1528 = vmul.f32 %v1514, %v1526
    %v1529 = vmul.f32 %v1517, %v1527
    %v1530 = vpack.c.bf16 %v1529, %v1528
    %v1531 = vld [vmem:[#allocation2 + $0xe0] sm:$0xff]
    %v1532 = vld [vmem:[#allocation2 + $0xe8] sm:$0xff]
    %v1533 = vld [vmem:[#allocation2 + $0xf0] sm:$0xff]
    %v1534 = vld [vmem:[#allocation2 + $0xf8] sm:$0xff]
    %1535 = vmatpush.bf16.msra.mxu0 %v708
    %1536 = vmatpush.bf16.msra.mxu0 %v704
    %1537 = vmatpush.bf16.msra.mxu0 %v700
    %1538 = vmatpush.bf16.msra.mxu0 %v696
    %1539 = vmatpush.bf16.msra.mxu0 %v692
    %1540 = vmatpush.bf16.msra.mxu0 %v688
    %1541 = vmatpush.bf16.msra.mxu0 %v684
    %1542 = vmatpush.bf16.msra.mxu0 %v680
    %1543 = vmatmul.bf16.gmra.mxu0 %v1530
    %v1544 = vpop.f32.mrf.mxu0
    %v1545 = vadd.f32 0.0, %v1544
    %v1546 = vpop.f32.mrf.mxu0
    %v1547 = vadd.f32 0.0, %v1546
    %1548 = vdwg.mxu0
    %1549 = vmatpush.bf16.msra.mxu0 %v709
    %1550 = vmatpush.bf16.msra.mxu0 %v705
    %1551 = vmatpush.bf16.msra.mxu0 %v701
    %1552 = vmatpush.bf16.msra.mxu0 %v697
    %1553 = vmatpush.bf16.msra.mxu0 %v693
    %1554 = vmatpush.bf16.msra.mxu0 %v689
    %1555 = vmatpush.bf16.msra.mxu0 %v685
    %1556 = vmatpush.bf16.msra.mxu0 %v681
    %1557 = vmatmul.bf16.gmra.mxu0 %v1530
    %v1558 = vpop.f32.mrf.mxu0
    %v1559 = vadd.f32 0.0, %v1558
    %v1560 = vpop.f32.mrf.mxu0
    %v1561 = vadd.f32 0.0, %v1560
    %1562 = vdwg.mxu0
    %1563 = vmatpush.bf16.msra.mxu0 %v710
    %1564 = vmatpush.bf16.msra.mxu0 %v706
    %1565 = vmatpush.bf16.msra.mxu0 %v702
    %1566 = vmatpush.bf16.msra.mxu0 %v698
    %1567 = vmatpush.bf16.msra.mxu0 %v694
    %1568 = vmatpush.bf16.msra.mxu0 %v690
    %1569 = vmatpush.bf16.msra.mxu0 %v686
    %1570 = vmatpush.bf16.msra.mxu0 %v682
    %1571 = vmatmul.bf16.gmra.mxu0 %v1530
    %v1572 = vpop.f32.mrf.mxu0
    %v1573 = vadd.f32 0.0, %v1572
    %v1574 = vpop.f32.mrf.mxu0
    %v1575 = vadd.f32 0.0, %v1574
    %1576 = vdwg.mxu0
    %1577 = vmatpush.bf16.msra.mxu0 %v711
    %1578 = vmatpush.bf16.msra.mxu0 %v707
    %1579 = vmatpush.bf16.msra.mxu0 %v703
    %1580 = vmatpush.bf16.msra.mxu0 %v699
    %1581 = vmatpush.bf16.msra.mxu0 %v695
    %1582 = vmatpush.bf16.msra.mxu0 %v691
    %1583 = vmatpush.bf16.msra.mxu0 %v687
    %1584 = vmatpush.bf16.msra.mxu0 %v683
    %1585 = vmatmul.bf16.gmra.mxu0 %v1530
    %v1586 = vpop.f32.mrf.mxu0
    %v1587 = vadd.f32 0.0, %v1586
    %v1588 = vpop.f32.mrf.mxu0
    %v1589 = vadd.f32 0.0, %v1588
    %1590 = vdwg.mxu0
    %v1591 = vunpack.c.l.bf16 %v1531
    %v1592 = vunpack.c.h.bf16 %v1531
    %v1593 = vunpack.c.l.bf16 %v1532
    %v1594 = vunpack.c.h.bf16 %v1532
    %v1595 = vunpack.c.l.bf16 %v1533
    %v1596 = vunpack.c.h.bf16 %v1533
    %v1597 = vunpack.c.l.bf16 %v1534
    %v1598 = vunpack.c.h.bf16 %v1534
    %v1599 = vadd.f32 %v1591, %v1545
    %v1600 = vadd.f32 %v1592, %v1559
    %v1601 = vadd.f32 %v1593, %v1573
    %v1602 = vadd.f32 %v1594, %v1587
    %v1603 = vadd.f32 %v1595, %v1547
    %v1604 = vadd.f32 %v1596, %v1561
    %v1605 = vadd.f32 %v1597, %v1575
    %v1606 = vadd.f32 %v1598, %v1589
    %v1607 = vmul.f32 %v1599, 0.5
    %v1608 = vmul.f32 %v1600, 0.5
    %v1609 = vmul.f32 %v1601, 0.5
    %v1610 = vmul.f32 %v1603, 0.5
    %v1611 = vmul.f32 %v1604, 0.5
    %v1612 = vmul.f32 %v1605, 0.5
    %v1613 = vtanh.pop %v1607
    %v1614 = vtanh.pop %v1608
    %v1615 = vtanh.pop %v1609
    %v1616 = vtanh.pop %v1610
    %v1617 = vtanh.pop %v1611
    %v1618 = vtanh.pop %v1612
    %v1619 = vmul.f32 %v1613, 0.5
    %v1620 = vmul.f32 %v1614, 0.5
    %v1621 = vmul.f32 %v1615, 0.5
    %v1622 = vmul.f32 %v1616, 0.5
    %v1623 = vmul.f32 %v1617, 0.5
    %v1624 = vmul.f32 %v1618, 0.5
    %v1625 = vadd.f32 %v1619, 0.5
    %v1626 = vadd.f32 %v1620, 0.5
    %v1627 = vadd.f32 %v1621, 0.5
    %v1628 = vadd.f32 %v1622, 0.5
    %v1629 = vadd.f32 %v1623, 0.5
    %v1630 = vadd.f32 %v1624, 0.5
    %v1631 = vtanh.pop %v1602
    %v1632 = vtanh.pop %v1606
    %v1633 = vmul.f32 %v1626, %v1524
    %v1634 = vmul.f32 %v1629, %v1525
    %v1635 = vmul.f32 %v1625, %v1631
    %v1636 = vmul.f32 %v1628, %v1632
    %v1637 = vadd.f32 %v1633, %v1635
    %v1638 = vadd.f32 %v1634, %v1636
    %v1639 = vtanh.pop %v1637
    %v1640 = vtanh.pop %v1638
    %v1641 = vmul.f32 %v1627, %v1639
    %v1642 = vmul.f32 %v1630, %v1640
    %v1643 = vpack.c.bf16 %v1642, %v1641
    %v1644 = vld [vmem:[#allocation11] sm:$0xf]
    %v1645 = vld [vmem:[#allocation11 + $0x4] sm:$0xf]
    %v1646 = vld [vmem:[#allocation11 + $0x8] sm:$0xf]
    %v1647 = vld [vmem:[#allocation11 + $0xc] sm:$0xf]
    %v1648 = vld [vmem:[#allocation11 + $0x10] sm:$0xf]
    %v1649 = vld [vmem:[#allocation11 + $0x14] sm:$0xf]
    %v1650 = vld [vmem:[#allocation11 + $0x18] sm:$0xf]
    %v1651 = vld [vmem:[#allocation11 + $0x1c] sm:$0xf]
    %v1652 = vld [vmem:[#allocation11 + $0x20] sm:$0xf]
    %v1653 = vld [vmem:[#allocation11 + $0x24] sm:$0xf]
    %v1654 = vld [vmem:[#allocation11 + $0x28] sm:$0xf]
    %v1655 = vld [vmem:[#allocation11 + $0x2c] sm:$0xf]
    %v1656 = vld [vmem:[#allocation11 + $0x30] sm:$0xf]
    %v1657 = vld [vmem:[#allocation11 + $0x34] sm:$0xf]
    %v1658 = vld [vmem:[#allocation11 + $0x38] sm:$0xf]
    %v1659 = vld [vmem:[#allocation11 + $0x3c] sm:$0xf]
    %v1660 = vld [vmem:[%s5] sm:$0x1]
    %v1662 = vperm.slane %v1660, 0
    %v1680 = vunpack.c.l.b16 %v1644
    %v1681 = vunpack.c.l.b16 %v1645
    %v1682 = vunpack.c.l.b16 %v1646
    %v1683 = vunpack.c.l.b16 %v1647
    %v1684 = vunpack.c.l.b16 %v1648
    %v1685 = vunpack.c.l.b16 %v1649
    %v1686 = vunpack.c.l.b16 %v1650
    %v1687 = vunpack.c.l.b16 %v1651
    %v1688 = vunpack.c.l.b16 %v1652
    %v1689 = vunpack.c.l.b16 %v1653
    %v1690 = vunpack.c.l.b16 %v1654
    %v1691 = vunpack.c.l.b16 %v1655
    %v1692 = vunpack.c.l.b16 %v1656
    %v1693 = vunpack.c.l.b16 %v1657
    %v1694 = vunpack.c.l.b16 %v1658
    %v1695 = vunpack.c.l.b16 %v1659
    %v1696 = vpack.c.b16 %v1681, %v1680
    %v1697 = vpack.c.b16 %v1683, %v1682
    %v1698 = vpack.c.b16 %v1685, %v1684
    %v1699 = vpack.c.b16 %v1687, %v1686
    %v1700 = vpack.c.b16 %v1689, %v1688
    %v1701 = vpack.c.b16 %v1691, %v1690
    %v1702 = vpack.c.b16 %v1693, %v1692
    %v1703 = vpack.c.b16 %v1695, %v1694
    %1712 = vmatpush.bf16.msra.mxu0 %v1703
    %1713 = vmatpush.bf16.msra.mxu0 %v1702
    %1714 = vmatpush.bf16.msra.mxu0 %v1701
    %1715 = vmatpush.bf16.msra.mxu0 %v1700
    %1716 = vmatpush.bf16.msra.mxu0 %v1699
    %1717 = vmatpush.bf16.msra.mxu0 %v1698
    %1718 = vmatpush.bf16.msra.mxu0 %v1697
    %1719 = vmatpush.bf16.msra.mxu0 %v1696
    %1720 = vmatmul.bf16.gmra.mxu0 %v1643
    %v1721 = vpop.f32.mrf.mxu0
    %v1722 = vadd.f32 %v1662, %v1721
    %v1723 = vpop.f32.mrf.mxu0
    %v1724 = vadd.f32 %v1662, %v1723
    %1725 = vdwg.mxu0
    %1726 = vst [vmem:[#allocation12] sm:$0xff] %v1722
    %1727 = vst [vmem:[#allocation12 + $0x8] sm:$0xff] %v1724
    // Predicated region
    $region46: #{tpu_custom_call.1} parent=1 // pred_check
      _
    $region47: #{tpu_custom_call.1} parent=1 // pred_check_branch
      %1729 = sbr.rel (0) target = $region49
    $region48: #{tpu_custom_call.1} parent=1 // pred_region
      %1731 = vsyncadd [#allocation5], 0
      %s1732 = sshll.u32 [#allocation12], 4
      %s1733 = int_to_ptr.vmem [resolvable:$true] %s1732
      %s1734 = sshll.u32 %s6, 4
      %s1735 = int_to_ptr.hbm [resolvable:$true] %s1734
      %1740 = dma.vmem_to_hbm [thread:$0]  %s1733, 256, %s1735, [#allocation5], 128, 128, 8
    $region49: #{tpu_custom_call.1} parent=1 // pred_fallthru
      _
    // Predicated region
    $region50: #{tpu_custom_call.1} parent=1 // pred_check
      _
    $region51: #{tpu_custom_call.1} parent=1 // pred_check_branch
      %1742 = sbr.rel (0) target = $region53
    $region52: #{tpu_custom_call.1} parent=1 // pred_region
      %1744 = dma.done [#allocation5], 256
    $region53: #{tpu_custom_call.1} parent=1 // pred_fallthru
      _
    %1745 = vsyncpa [#allocation4], 1
    %1746 = vsyncpa [#allocation7], 1
    %1747 = vsyncpa [#allocation10], 1
    %1748 = vsyncpa [#allocation5], 1

</llo_original>
